<compile_context>
chip_gen: v7x
topology: tpu7x:2x2x1
jax: 0.10.0
libtpu: 0.0.40
codegen_flags: <defaults>
</compile_context>

<pallas_src>
import functools

import numpy as np
import jax
import jax.numpy as jnp
from jax import lax
from jax.experimental import pallas as pl
from jax.experimental.pallas import tpu as pltpu


BN_EPS = 1e-5            # torch.nn.BatchNorm1d default
DROPOUT_P = 0.5          # torch.nn.Dropout(0.5)
DROPOUT_SCALE = 1.0 / (1.0 - DROPOUT_P)


def _splitmix32(x):
    """Stateless 32-bit mix (splitmix32-style); pure jnp, lowers everywhere."""
    x = x + np.uint32(0x9E3779B9)
    x = x ^ (x >> 16)
    x = x * np.uint32(0x21F0AAAD)
    x = x ^ (x >> 15)
    x = x * np.uint32(0x735A2D97)
    x = x ^ (x >> 15)
    return x


def encoder_head_kernel(block_e, seed_ref, x_ref, w_ref, gb_ref,
                        o_ref, mean_ref, var_ref):
    j = pl.program_id(0)                       # E-tile index

    # ---- Linear(1280, E_tile): bf16 MXU matmul, f32 accumulate --------------
    # W tile is a contiguous (te, F) row slab of the torch-layout weight;
    # contract on the shared feature axis.
    y = lax.dot_general(x_ref[...], w_ref[...],
                        dimension_numbers=(((1,), (1,)), ((), ())),
                        preferred_element_type=jnp.float32)   # (B, TE) f32

    # ---- BatchNorm1d, training-mode batch statistics (biased variance) ------
    mean = jnp.mean(y, axis=0, keepdims=True)                 # (1, TE)
    var = jnp.mean((y - mean) ** 2, axis=0, keepdims=True)    # (1, TE)
    inv = lax.rsqrt(var + BN_EPS)                             # EUP slot

    gb = gb_ref[...]                                          # (2, TE)
    gamma = gb[0:1, :]
    beta = gb[1:2, :]
    # Fold BN scale/shift and dropout 1/(1-p) into two (1, TE) vectors.
    s = gamma * inv * DROPOUT_SCALE                           # (1, TE)
    t = (beta - mean * gamma * inv) * DROPOUT_SCALE           # (1, TE)

    # ---- Dropout(p=0.5): counter-based hash PRNG -----------------------------
    B, TE = y.shape
    row = lax.broadcasted_iota(jnp.uint32, (B, TE), 0)
    col = lax.broadcasted_iota(jnp.uint32, (B, TE), 1)
    gcol = col + (j * block_e).astype(jnp.uint32)             # global feature id
    counter = (row << 16) | gcol                              # unique (B<2^16, E<=2^16)
    seed_mixed = seed_ref[0].astype(jnp.uint32) * np.uint32(0x9E3779B1)  # scalar
    bits = _splitmix32(counter ^ seed_mixed)
    keep = bits < np.uint32(0x80000000)                       # p(keep) = 0.5

    o_ref[...] = jnp.where(keep, y * s + t, 0.0).astype(o_ref.dtype)
    mean_ref[...] = mean
    var_ref[...] = var


def _choose_block_e(E, max_te=512):
    """Largest divisor of E that is a multiple of 256 (then 128, then 8),
    capped at max_te, preferring >= 2 tiles so both v7x TensorCores get work."""
    for base in (256, 128, 8):
        cands = [m for m in range(base, min(E, max_te) + 1, base) if E % m == 0]
        if cands:
            multi = [m for m in cands if E // m >= 2]
            return max(multi) if multi else max(cands)
    return E


def encoder_cnn_forward(features, w_t, gamma, beta, seed, *, block_e=None):
    """features: (B, 1280, 1, 1) NCHW backbone output.

    w_t:   (embed, 1280) Linear weight in torch layout (out_features, in_features)
    gamma: (embed,) BN weight;  beta: (embed,) BN bias
    seed:  (1,) int32 dropout seed (vary per training step)

    Returns (out, batch_mean, batch_var):
      out        (B, embed) bf16  -- dropout(bn(linear(x)))
      batch_mean (1, embed) f32   -- BN batch mean (for running-stat updates)
      batch_var  (1, embed) f32   -- biased BN batch var (x B/(B-1) for torch running_var)
    """
    B = features.shape[0]
    x = features.reshape(B, -1).astype(jnp.bfloat16)     # (B, F) bf16 stream
    E, F_in = w_t.shape
    assert x.shape == (B, F_in)

    te = block_e if block_e is not None else _choose_block_e(E)
    assert E % te == 0, "embed_size must be divisible by the E tile"

    w_bf16 = w_t.astype(jnp.bfloat16)                    # halve weight DMA bytes
    gb = jnp.concatenate(
        [gamma.reshape(1, E).astype(jnp.float32),
         beta.reshape(1, E).astype(jnp.float32)], axis=0)  # (2, E)

    kernel = functools.partial(encoder_head_kernel, te)

    return pl.pallas_call(
        kernel,
        out_shape=(
            jax.ShapeDtypeStruct((B, E), jnp.bfloat16),
            jax.ShapeDtypeStruct((1, E), jnp.float32),
            jax.ShapeDtypeStruct((1, E), jnp.float32),
        ),
        grid=(E // te,),                                  # E-parallel (BN is per-feature)
        in_specs=[
            pl.BlockSpec(memory_space=pltpu.MemorySpace.SMEM),  # dropout seed
            pl.BlockSpec((B, F_in), lambda j: (0, 0)),          # x (resident)
            pl.BlockSpec((te, F_in), lambda j: (j, 0)),         # W row tile (contiguous)
            pl.BlockSpec((2, te), lambda j: (0, j)),            # packed gamma/beta
        ],
        out_specs=(
            pl.BlockSpec((B, te), lambda j: (0, j)),
            pl.BlockSpec((1, te), lambda j: (0, j)),
            pl.BlockSpec((1, te), lambda j: (0, j)),
        ),
        compiler_params=pltpu.CompilerParams(
            dimension_semantics=("parallel",)),
    )(seed, x, w_bf16, gb)


if __name__ == "__main__":
    # embed_size = 512 -> te = 256 (multiple of 256, 2 parallel tiles for v7x).
    B, F_IN, EMBED = 8, 1280, 512

    key = jax.random.PRNGKey(0)
    k_feat, k_w = jax.random.split(key, 2)

    # Stand-in for the frozen EfficientNet-B0 pooled features (B, 1280, 1, 1).
    features = jax.random.normal(k_feat, (B, F_IN, 1, 1), dtype=jnp.float32)

    # Linear(1280, embed) weight, torch layout (out, in); bias omitted
    # (no-op under training-mode BatchNorm).
    w_t = jax.random.normal(k_w, (EMBED, F_IN), dtype=jnp.float32) / jnp.sqrt(
        jnp.float32(F_IN))

    # BatchNorm1d(embed) default init: weight=1, bias=0.
    gamma = jnp.ones((EMBED,), dtype=jnp.float32)
    beta = jnp.zeros((EMBED,), dtype=jnp.float32)

    seed = jnp.array([0], dtype=jnp.int32)

    out, bmean, bvar = encoder_cnn_forward(features, w_t, gamma, beta, seed)
    out = jax.block_until_ready(out)
    assert out.shape == (B, EMBED) and out.dtype == jnp.bfloat16
    assert bool(jnp.all(jnp.isfinite(out.astype(jnp.float32))))
    assert bmean.shape == (1, EMBED) and bvar.shape == (1, EMBED)
    assert bool(jnp.all(jnp.isfinite(bmean))) and bool(jnp.all(bvar >= 0.0))
    print("KERNEL_OK")
</pallas_src>

<mosaic_0001>
module attributes {stable_mosaic.version = 11 : i64} {
  func.func @encoder_head_kernel(%arg0: i32, %arg1: memref<1xi32, #tpu.memory_space<smem>>, %arg2: memref<8x1280xbf16, #tpu.memory_space<vmem>>, %arg3: memref<256x1280xbf16, #tpu.memory_space<vmem>>, %arg4: memref<2x256xf32, #tpu.memory_space<vmem>>, %arg5: memref<8x256xbf16, #tpu.memory_space<vmem>>, %arg6: memref<1x256xf32, #tpu.memory_space<vmem>>, %arg7: memref<1x256xf32, #tpu.memory_space<vmem>>) attributes {dimension_semantics = [#tpu.dimension_semantics<parallel>], iteration_bounds = array<i64: 2>, scalar_prefetch = 0 : i64, scratch_operands = 0 : i64, tpu.core_type = #tpu.core_type<tc>, window_params = [{transform_indices = @transform_0, window_bounds = array<i64: 1>}, {pipeline_mode = #tpu.pipeline_mode<synchronous>, transform_indices = @transform_1, window_bounds = array<i64: 8, 1280>}, {transform_indices = @transform_2, window_bounds = array<i64: 256, 1280>}, {transform_indices = @transform_3, window_bounds = array<i64: 2, 256>}, {transform_indices = @transform_4, window_bounds = array<i64: 8, 256>}, {transform_indices = @transform_5, window_bounds = array<i64: 1, 256>}, {transform_indices = @transform_6, window_bounds = array<i64: 1, 256>}]} {
    %c0 = arith.constant 0 : index
    %c0_0 = arith.constant 0 : index
    %0 = vector.load %arg2[%c0, %c0_0] : memref<8x1280xbf16, #tpu.memory_space<vmem>>, vector<8x1280xbf16>
    %c0_1 = arith.constant 0 : index
    %c0_2 = arith.constant 0 : index
    %1 = vector.load %arg3[%c0_1, %c0_2] : memref<256x1280xbf16, #tpu.memory_space<vmem>>, vector<256x1280xbf16>
    %cst = arith.constant dense<0.000000e+00> : vector<8x256xf32>
    %2 = tpu.matmul %0, %1, %cst {dimension_numbers = #tpu.dot_dimension_numbers<[1], [1], [0], [0], [0, 0, 1, 0], [], []>} : vector<8x1280xbf16>, vector<256x1280xbf16>, vector<8x256xf32> -> vector<8x256xf32>
    %cst_3 = arith.constant dense<0.000000e+00> : vector<256xf32>
    %3 = vector.multi_reduction <add>, %2, %cst_3 [0] : vector<8x256xf32> to vector<256xf32>
    %4 = vector.shape_cast %3 : vector<256xf32> to vector<1x256xf32>
    %cst_4 = arith.constant 8.000000e+00 : f32
    %5 = vector.broadcast %cst_4 : f32 to vector<1x256xf32>
    %6 = arith.divf %4, %5 : vector<1x256xf32>
    %7 = vector.broadcast %6 : vector<1x256xf32> to vector<8x256xf32>
    %8 = arith.subf %2, %7 : vector<8x256xf32>
    %9 = arith.mulf %8, %8 : vector<8x256xf32>
    %cst_5 = arith.constant dense<0.000000e+00> : vector<256xf32>
    %10 = vector.multi_reduction <add>, %9, %cst_5 [0] : vector<8x256xf32> to vector<256xf32>
    %11 = vector.shape_cast %10 : vector<256xf32> to vector<1x256xf32>
    %cst_6 = arith.constant 8.000000e+00 : f32
    %12 = vector.broadcast %cst_6 : f32 to vector<1x256xf32>
    %13 = arith.divf %11, %12 : vector<1x256xf32>
    %cst_7 = arith.constant 9.99999974E-6 : f32
    %14 = vector.broadcast %cst_7 : f32 to vector<1x256xf32>
    %15 = arith.addf %13, %14 : vector<1x256xf32>
    %16 = math.rsqrt %15 : vector<1x256xf32>
    %c0_8 = arith.constant 0 : index
    %c0_9 = arith.constant 0 : index
    %17 = vector.load %arg4[%c0_8, %c0_9] : memref<2x256xf32, #tpu.memory_space<vmem>>, vector<2x256xf32>
    %18 = vector.extract_strided_slice %17 {offsets = [0, 0], sizes = [1, 256], strides = [1, 1]} : vector<2x256xf32> to vector<1x256xf32>
    %19 = vector.extract_strided_slice %17 {offsets = [1, 0], sizes = [1, 256], strides = [1, 1]} : vector<2x256xf32> to vector<1x256xf32>
    %20 = arith.mulf %18, %16 : vector<1x256xf32>
    %cst_10 = arith.constant 2.000000e+00 : f32
    %21 = vector.broadcast %cst_10 : f32 to vector<1x256xf32>
    %22 = arith.mulf %20, %21 : vector<1x256xf32>
    %23 = arith.mulf %6, %18 : vector<1x256xf32>
    %24 = arith.mulf %23, %16 : vector<1x256xf32>
    %25 = arith.subf %19, %24 : vector<1x256xf32>
    %cst_11 = arith.constant 2.000000e+00 : f32
    %26 = vector.broadcast %cst_11 : f32 to vector<1x256xf32>
    %27 = arith.mulf %25, %26 : vector<1x256xf32>
    %28 = tpu.iota {dimensions = array<i32: 0>} : vector<8x256xi32>
    %29 = tpu.iota {dimensions = array<i32: 1>} : vector<8x256xi32>
    %c256_i32 = arith.constant 256 : i32
    %30 = arith.muli %arg0, %c256_i32 : i32
    %31 = vector.broadcast %30 : i32 to vector<8x256xi32>
    %32 = arith.addi %29, %31 : vector<8x256xi32>
    %c16_i32 = arith.constant 16 : i32
    %33 = vector.broadcast %c16_i32 : i32 to vector<8x256xi32>
    %34 = arith.shli %28, %33 : vector<8x256xi32>
    %35 = arith.ori %34, %32 : vector<8x256xi32>
    %c0_12 = arith.constant 0 : index
    %36 = memref.load %arg1[%c0_12] : memref<1xi32, #tpu.memory_space<smem>>
    %c-1640531535_i32 = arith.constant -1640531535 : i32
    %37 = arith.muli %36, %c-1640531535_i32 : i32
    %38 = vector.broadcast %37 : i32 to vector<8x256xi32>
    %39 = arith.xori %35, %38 : vector<8x256xi32>
    %c-1640531527_i32 = arith.constant -1640531527 : i32
    %40 = vector.broadcast %c-1640531527_i32 : i32 to vector<8x256xi32>
    %41 = arith.addi %39, %40 : vector<8x256xi32>
    %c16_i32_13 = arith.constant 16 : i32
    %42 = vector.broadcast %c16_i32_13 : i32 to vector<8x256xi32>
    %43 = arith.shrui %41, %42 : vector<8x256xi32>
    %44 = arith.xori %41, %43 : vector<8x256xi32>
    %c569420461_i32 = arith.constant 569420461 : i32
    %45 = vector.broadcast %c569420461_i32 : i32 to vector<8x256xi32>
    %46 = arith.muli %44, %45 : vector<8x256xi32>
    %c15_i32 = arith.constant 15 : i32
    %47 = vector.broadcast %c15_i32 : i32 to vector<8x256xi32>
    %48 = arith.shrui %46, %47 : vector<8x256xi32>
    %49 = arith.xori %46, %48 : vector<8x256xi32>
    %c1935289751_i32 = arith.constant 1935289751 : i32
    %50 = vector.broadcast %c1935289751_i32 : i32 to vector<8x256xi32>
    %51 = arith.muli %49, %50 : vector<8x256xi32>
    %c15_i32_14 = arith.constant 15 : i32
    %52 = vector.broadcast %c15_i32_14 : i32 to vector<8x256xi32>
    %53 = arith.shrui %51, %52 : vector<8x256xi32>
    %54 = arith.xori %51, %53 : vector<8x256xi32>
    %c-2147483648_i32 = arith.constant -2147483648 : i32
    %55 = vector.broadcast %c-2147483648_i32 : i32 to vector<8x256xi32>
    %56 = arith.cmpi ult, %54, %55 : vector<8x256xi32>
    %57 = vector.broadcast %22 : vector<1x256xf32> to vector<8x256xf32>
    %58 = arith.mulf %2, %57 : vector<8x256xf32>
    %59 = vector.broadcast %27 : vector<1x256xf32> to vector<8x256xf32>
    %60 = arith.addf %58, %59 : vector<8x256xf32>
    %cst_15 = arith.constant 0.000000e+00 : f32
    %61 = vector.broadcast %cst_15 : f32 to vector<8x256xf32>
    %62 = arith.select %56, %60, %61 : vector<8x256xi1>, vector<8x256xf32>
    %63 = arith.truncf %62 : vector<8x256xf32> to vector<8x256xbf16>
    %c0_16 = arith.constant 0 : index
    %c0_17 = arith.constant 0 : index
    %64 = vector.load %arg5[%c0_16, %c0_17] : memref<8x256xbf16, #tpu.memory_space<vmem>>, vector<8x256xbf16>
    tpu.vector_store %arg5[%c0_16, %c0_17], %63 {strides = array<i32>} : memref<8x256xbf16, #tpu.memory_space<vmem>>, vector<8x256xbf16>,
    %c0_18 = arith.constant 0 : index
    %c0_19 = arith.constant 0 : index
    %65 = vector.load %arg6[%c0_18, %c0_19] : memref<1x256xf32, #tpu.memory_space<vmem>>, vector<1x256xf32>
    tpu.vector_store %arg6[%c0_18, %c0_19], %6 {strides = array<i32>} : memref<1x256xf32, #tpu.memory_space<vmem>>, vector<1x256xf32>,
    %c0_20 = arith.constant 0 : index
    %c0_21 = arith.constant 0 : index
    %66 = vector.load %arg7[%c0_20, %c0_21] : memref<1x256xf32, #tpu.memory_space<vmem>>, vector<1x256xf32>
    tpu.vector_store %arg7[%c0_20, %c0_21], %13 {strides = array<i32>} : memref<1x256xf32, #tpu.memory_space<vmem>>, vector<1x256xf32>,
    return
  }
  func.func @transform_0(%arg0: i32) -> i32 {
    %c0_i32 = arith.constant 0 : i32
    %c0_i32_0 = arith.constant 0 : i32
    return %c0_i32 : i32
  }
  func.func @transform_1(%arg0: i32) -> (i32, i32) {
    %c0_i32 = arith.constant 0 : i32
    %c0_i32_0 = arith.constant 0 : i32
    %c0_i32_1 = arith.constant 0 : i32
    return %c0_i32, %c0_i32_0 : i32, i32
  }
  func.func @transform_2(%arg0: i32) -> (i32, i32) {
    %c0_i32 = arith.constant 0 : i32
    %c0_i32_0 = arith.constant 0 : i32
    return %arg0, %c0_i32 : i32, i32
  }
  func.func @transform_3(%arg0: i32) -> (i32, i32) {
    %c0_i32 = arith.constant 0 : i32
    %c0_i32_0 = arith.constant 0 : i32
    return %c0_i32, %arg0 : i32, i32
  }
  func.func @transform_4(%arg0: i32) -> (i32, i32) {
    %c0_i32 = arith.constant 0 : i32
    %c0_i32_0 = arith.constant 0 : i32
    return %c0_i32, %arg0 : i32, i32
  }
  func.func @transform_5(%arg0: i32) -> (i32, i32) {
    %c0_i32 = arith.constant 0 : i32
    %c0_i32_0 = arith.constant 0 : i32
    return %c0_i32, %arg0 : i32, i32
  }
  func.func @transform_6(%arg0: i32) -> (i32, i32) {
    %c0_i32 = arith.constant 0 : i32
    %c0_i32_0 = arith.constant 0 : i32
    return %c0_i32, %arg0 : i32, i32
  }
}

</mosaic_0001>

<llo_original>
// kernel: tpu_custom_call.1
$region0: #{tpu_custom_call.1}
  #allocation0 [shape = 'u32[]', space=smem, size = 0x4, offset = 0x4, fixed_abs, tag = 'smem constant byte address 0x4 - core index']
  #allocation1 [shape = 'u32[144,128]{1,0:T(1,128)}', space=vmem, size = 0x12000, scoped, tag = 'internal scratch']
  #allocation2 [shape = 's32[1]{0:T(128)S(6)}', space=smem, size = 0x200, scoped, tag = 'scoped memory for tpu_custom_call.1']
  %s0 = inlined_call_operand.<no memory space> [shape: s32[1], index: 0, kind: input, shape index: {}]
  %s1 = inlined_call_operand.hbm [shape: bf16[8,1280], index: 1, kind: input, shape index: {}]
  %s2 = inlined_call_operand.hbm [shape: bf16[512,1280], index: 2, kind: input, shape index: {}]
  %s3 = inlined_call_operand.hbm [shape: f32[2,512], index: 3, kind: input, shape index: {}]
  %s4 = inlined_call_operand.hbm [shape: bf16[8,512], index: 4, kind: output, shape index: {0}]
  %s5 = inlined_call_operand.hbm [shape: f32[1,512], index: 5, kind: output, shape index: {1}]
  %s6 = inlined_call_operand.hbm [shape: f32[1,512], index: 6, kind: output, shape index: {2}]
  %7 = xla_tuple %s4, %s5, %s6
  %s8 = sld [smem:[#allocation0]]
  $region77: #{tpu_custom_call.1} parent=0
    _
  %s10 = ssub.s32 1, %s8
  %s11 = scalar_select 0, %s10, %s8
  %12 = sst [smem:[#allocation2]] %s0
  $region1: #{tpu_custom_call.1} parent=0
    #allocation3 [shape = 'u8[20480]{0}', space=vmem, size = 0x5000, scoped, tag = 'input window, operand 1, single buffered']
    #allocation4 [shape = 's32[2]{0}', space=sflag, size = 0x8, scoped, tag = 'scoped memory for tpu_custom_call.1']
    #allocation5 [shape = 's32[2]{0}', space=sflag, size = 0x8, scoped, tag = 'scoped memory for tpu_custom_call.1']
    #allocation6 [shape = 'u8[1310720]{0}', space=vmem, size = 0x140000, scoped, tag = 'input window, operand 2']
    #allocation7 [shape = 's32[2]{0}', space=sflag, size = 0x8, scoped, tag = 'scoped memory for tpu_custom_call.1']
    #allocation8 [shape = 'u8[4096]{0}', space=vmem, size = 0x1000, scoped, tag = 'input window, operand 3']
    #allocation9 [shape = 'u8[8192]{0}', space=vmem, size = 0x2000, scoped, tag = 'output window, operand 0']
    #allocation10 [shape = 'u8[2048]{0}', space=vmem, size = 0x800, scoped, tag = 'output window, operand 1']
    #allocation11 [shape = 's32[2]{0}', space=sflag, size = 0x8, scoped, tag = 'scoped memory for tpu_custom_call.1']
    #allocation12 [shape = 'u8[2048]{0}', space=vmem, size = 0x800, scoped, tag = 'output window, operand 2']
    %13 = vsyncpa [#allocation4], 0
    %14 = vsyncpa [#allocation7], 0
    %s15 = scalar_lea.sflag [#allocation7], 1
    %16 = vsyncpa %s15, 0
    %17 = vsyncpa [#allocation5], 0
    %s18 = scalar_lea.sflag [#allocation5], 1
    %19 = vsyncpa %s18, 0
    %20 = vsyncpa [#allocation11], 0
    %s21 = scalar_lea.sflag [#allocation11], 1
    %22 = vsyncpa %s21, 0
    loop: start=0, step=1, limit=4
    $region2: #{tpu_custom_call.1} parent=1 // loop_pre_header
      _
    $region3: #{tpu_custom_call.1} parent=1 // loop_header
      %s24 = sphi 0, %s28
      %p25 = scmp.ge.s32.totalorder %s24, 4
      %s32 = sphi 0, %s32
      %s34 = sphi 0, %s32
      %s35 = sphi 0, %s34
      %s49 = sphi 0, %s35
      %s53 = sphi 0, %s53
      %s55 = sphi 0, %s53
      %s56 = sphi 0, %s55
      %s70 = sphi 0, %s56
      %s76 = sphi 0, %s78
      %s79 = sphi 0, %s76
      %s80 = sphi 0, %s79
      %s96 = sphi 0, %s80
      %s102 = sphi 0, %s104
      %s105 = sphi 0, %s102
      %s106 = sphi 0, %s105
      %s122 = sphi 0, %s106
      %s128 = sphi 0, %s130
      %s131 = sphi 0, %s128
      %s132 = sphi 0, %s131
      %s148 = sphi 0, %s132
      %s154 = sphi 0, %s156
      %s157 = sphi 0, %s154
      %s158 = sphi 0, %s157
      %s174 = sphi 0, %s158
      %s180 = sphi 0, %s182
      %s183 = sphi 0, %s180
      %s184 = sphi 0, %s183
      %s200 = sphi 0, %s184
    $region4: #{tpu_custom_call.1} parent=1 // loop_header_branch
      %27 = sbr.rel (%p25) target = $region8
    $region5: #{tpu_custom_call.1} parent=1 // loop_body
      %s29 = ssub.s32 %s24, 1
      %s30 = ssub.s32 %s24, 2
      %s31 = sadd.s32 %s24, 1
      %s33 = sadd.s32 %s32, 1
      %p36 = scmp.eq.s32.totalorder %s24, 1
      %p37 = scmp.ne.s32.totalorder %s32, %s34
      %p38 = scmp.eq.s32.totalorder %s24, 0
      %p39 = por %p37, %p38
      %p40 = scmp.ne.s32.totalorder %s32, %s34
      %p41 = scmp.eq.s32.totalorder %s29, 1
      %p42 = por %p40, %p41
      %p43 = scmp.ne.s32.totalorder %s34, %s35
      %p44 = scmp.eq.s32.totalorder %s29, 0
      %p45 = por %p43, %p44
      %p46 = scmp.ne.s32.totalorder %s34, %s35
      %p47 = scmp.eq.s32.totalorder %s30, 1
      %p48 = por %p46, %p47
      %p50 = scmp.ne.s32.totalorder %s35, %s49
      %p51 = scmp.eq.s32.totalorder %s30, 0
      %p52 = por %p50, %p51
      %s54 = sadd.s32 %s53, 1
      %p57 = scmp.eq.s32.totalorder %s24, 1
      %p58 = scmp.ne.s32.totalorder %s53, %s55
      %p59 = scmp.eq.s32.totalorder %s24, 0
      %p60 = por %p58, %p59
      %p61 = scmp.ne.s32.totalorder %s53, %s55
      %p62 = scmp.eq.s32.totalorder %s29, 1
      %p63 = por %p61, %p62
      %p64 = scmp.ne.s32.totalorder %s55, %s56
      %p65 = scmp.eq.s32.totalorder %s29, 0
      %p66 = por %p64, %p65
      %p67 = scmp.ne.s32.totalorder %s55, %s56
      %p68 = scmp.eq.s32.totalorder %s30, 1
      %p69 = por %p67, %p68
      %p71 = scmp.ne.s32.totalorder %s56, %s70
      %p72 = scmp.eq.s32.totalorder %s30, 0
      %p73 = por %p71, %p72
      %s74 = ssub.s32 %s24, %s31
      %p75 = scmp.eq.s32.totalorder %s74, 0
      %s77 = sadd.s32 %s76, 1
      %s78 = scalar_select %p75, %s76, %s77
      %p81 = pneg %p75
      %p82 = scmp.eq.s32.totalorder %s24, 1
      %p83 = por %p81, %p82
      %p84 = scmp.ne.s32.totalorder %s76, %s79
      %p85 = scmp.eq.s32.totalorder %s24, 0
      %p86 = por %p84, %p85
      %p87 = scmp.ne.s32.totalorder %s76, %s79
      %p88 = scmp.eq.s32.totalorder %s29, 1
      %p89 = por %p87, %p88
      %p90 = scmp.ne.s32.totalorder %s79, %s80
      %p91 = scmp.eq.s32.totalorder %s29, 0
      %p92 = por %p90, %p91
      %p93 = scmp.ne.s32.totalorder %s79, %s80
      %p94 = scmp.eq.s32.totalorder %s30, 1
      %p95 = por %p93, %p94
      %p97 = scmp.ne.s32.totalorder %s80, %s96
      %p98 = scmp.eq.s32.totalorder %s30, 0
      %p99 = por %p97, %p98
      %s100 = ssub.s32 %s24, %s31
      %p101 = scmp.eq.s32.totalorder %s100, 0
      %s103 = sadd.s32 %s102, 1
      %s104 = scalar_select %p101, %s102, %s103
      %p107 = pneg %p101
      %p108 = scmp.eq.s32.totalorder %s24, 1
      %p109 = por %p107, %p108
      %p110 = scmp.ne.s32.totalorder %s102, %s105
      %p111 = scmp.eq.s32.totalorder %s24, 0
      %p112 = por %p110, %p111
      %p113 = scmp.ne.s32.totalorder %s102, %s105
      %p114 = scmp.eq.s32.totalorder %s29, 1
      %p115 = por %p113, %p114
      %p116 = scmp.ne.s32.totalorder %s105, %s106
      %p117 = scmp.eq.s32.totalorder %s29, 0
      %p118 = por %p116, %p117
      %p119 = scmp.ne.s32.totalorder %s105, %s106
      %p120 = scmp.eq.s32.totalorder %s30, 1
      %p121 = por %p119, %p120
      %p123 = scmp.ne.s32.totalorder %s106, %s122
      %p124 = scmp.eq.s32.totalorder %s30, 0
      %p125 = por %p123, %p124
      %s126 = ssub.s32 %s24, %s31
      %p127 = scmp.eq.s32.totalorder %s126, 0
      %s129 = sadd.s32 %s128, 1
      %s130 = scalar_select %p127, %s128, %s129
      %p133 = pneg %p127
      %p134 = scmp.eq.s32.totalorder %s24, 1
      %p135 = por %p133, %p134
      %p136 = scmp.ne.s32.totalorder %s128, %s131
      %p137 = scmp.eq.s32.totalorder %s24, 0
      %p138 = por %p136, %p137
      %p139 = scmp.ne.s32.totalorder %s128, %s131
      %p140 = scmp.eq.s32.totalorder %s29, 1
      %p141 = por %p139, %p140
      %p142 = scmp.ne.s32.totalorder %s131, %s132
      %p143 = scmp.eq.s32.totalorder %s29, 0
      %p144 = por %p142, %p143
      %p145 = scmp.ne.s32.totalorder %s131, %s132
      %p146 = scmp.eq.s32.totalorder %s30, 1
      %p147 = por %p145, %p146
      %p149 = scmp.ne.s32.totalorder %s132, %s148
      %p150 = scmp.eq.s32.totalorder %s30, 0
      %p151 = por %p149, %p150
      %s152 = ssub.s32 %s24, %s31
      %p153 = scmp.eq.s32.totalorder %s152, 0
      %s155 = sadd.s32 %s154, 1
      %s156 = scalar_select %p153, %s154, %s155
      %p159 = pneg %p153
      %p160 = scmp.eq.s32.totalorder %s24, 1
      %p161 = por %p159, %p160
      %p162 = scmp.ne.s32.totalorder %s154, %s157
      %p163 = scmp.eq.s32.totalorder %s24, 0
      %p164 = por %p162, %p163
      %p165 = scmp.ne.s32.totalorder %s154, %s157
      %p166 = scmp.eq.s32.totalorder %s29, 1
      %p167 = por %p165, %p166
      %p168 = scmp.ne.s32.totalorder %s157, %s158
      %p169 = scmp.eq.s32.totalorder %s29, 0
      %p170 = por %p168, %p169
      %p171 = scmp.ne.s32.totalorder %s157, %s158
      %p172 = scmp.eq.s32.totalorder %s30, 1
      %p173 = por %p171, %p172
      %p175 = scmp.ne.s32.totalorder %s158, %s174
      %p176 = scmp.eq.s32.totalorder %s30, 0
      %p177 = por %p175, %p176
      %s178 = ssub.s32 %s24, %s31
      %p179 = scmp.eq.s32.totalorder %s178, 0
      %s181 = sadd.s32 %s180, 1
      %s182 = scalar_select %p179, %s180, %s181
      %p185 = pneg %p179
      %p186 = scmp.eq.s32.totalorder %s24, 1
      %p187 = por %p185, %p186
      %p188 = scmp.ne.s32.totalorder %s180, %s183
      %p189 = scmp.eq.s32.totalorder %s24, 0
      %p190 = por %p188, %p189
      %p191 = scmp.ne.s32.totalorder %s180, %s183
      %p192 = scmp.eq.s32.totalorder %s29, 1
      %p193 = por %p191, %p192
      %p194 = scmp.ne.s32.totalorder %s183, %s184
      %p195 = scmp.eq.s32.totalorder %s29, 0
      %p196 = por %p194, %p195
      %p197 = scmp.ne.s32.totalorder %s183, %s184
      %p198 = scmp.eq.s32.totalorder %s30, 1
      %p199 = por %p197, %p198
      %p201 = scmp.ne.s32.totalorder %s184, %s200
      %p202 = scmp.eq.s32.totalorder %s30, 0
      %p203 = por %p201, %p202
      %p204 = scmp.le.s32.totalorder 1, %s24
      %p205 = scmp.lt.s32.totalorder %s24, 3
      %p206 = pnand %p204, %p205
      %p207 = pneg %p206
      // Predicated region
      $region9: #{tpu_custom_call.1} parent=5 // pred_check
        _
      $region10: #{tpu_custom_call.1} parent=5 // pred_check_branch
        %209 = sbr.rel (%p206) target = $region12
      $region11: #{tpu_custom_call.1} parent=5 // pred_region
        %s210 = ssub.s32 %s24, 1
        // Predicated region
        $region13: #{tpu_custom_call.1} parent=11 // pred_check
          %p211 = pneg %p45
        $region14: #{tpu_custom_call.1} parent=11 // pred_check_branch
          %213 = sbr.rel (%p211) target = $region16
        $region15: #{tpu_custom_call.1} parent=11 // pred_region
          _
        $region16: #{tpu_custom_call.1} parent=11 // pred_fallthru
          _
        // Predicated region
        $region17: #{tpu_custom_call.1} parent=11 // pred_check
          %p214 = pneg %p66
        $region18: #{tpu_custom_call.1} parent=11 // pred_check_branch
          %216 = sbr.rel (%p214) target = $region20
        $region19: #{tpu_custom_call.1} parent=11 // pred_region
          %s218 = ssub.s32 640, 640
          %219 = vsyncadd [#allocation4], %s218
          %s221 = sshll.u32 [#allocation3], 4
          %s222 = int_to_ptr.vmem [resolvable:$true] %s221
          %224 = dma.hbm_to_vmem [thread:$0]  %s1, 640, %s222, [#allocation4]
        $region20: #{tpu_custom_call.1} parent=11 // pred_fallthru
          _
      $region12: #{tpu_custom_call.1} parent=5 // pred_fallthru
        _
      %p225 = scmp.lt.s32.totalorder %s24, 2
      // Predicated region
      $region21: #{tpu_custom_call.1} parent=5 // pred_check
        %p226 = pneg %p225
      $region22: #{tpu_custom_call.1} parent=5 // pred_check_branch
        %228 = sbr.rel (%p226) target = $region24
      $region23: #{tpu_custom_call.1} parent=5 // pred_region
        // Predicated region
        $region25: #{tpu_custom_call.1} parent=23 // pred_check
          %p229 = pneg %p86
        $region26: #{tpu_custom_call.1} parent=23 // pred_check_branch
          %231 = sbr.rel (%p229) target = $region28
        $region27: #{tpu_custom_call.1} parent=23 // pred_region
          %s232 = sand.u32 %s24, 1
          %s233 = scalar_lea.sflag [#allocation7], %s232
          %s234 = sand.u32 %s76, 1
          %s235 = smul.addr %s234, 1280
          %s236 = scalar_lea.vmem [#allocation6], %s235
          %s237 = smul.u32 32, %s24
          %s239 = ssub.s32 20480, 20480
          %240 = vsyncadd %s233, %s239
          %s241 = smul.addr %s237, 10
          %s242 = smul.addr %s241, 64
          %s243 = scalar_lea.hbm %s2, %s242
          %s244 = sshll.u32 %s236, 4
          %s245 = int_to_ptr.vmem [resolvable:$true] %s244
          %250 = dma.hbm_to_vmem [thread:$0]  %s243, 20480, %s245, %s233, 640, 640, 40
        $region28: #{tpu_custom_call.1} parent=23 // pred_fallthru
          _
        // Predicated region
        $region29: #{tpu_custom_call.1} parent=23 // pred_check
          %p251 = pneg %p112
        $region30: #{tpu_custom_call.1} parent=23 // pred_check_branch
          %253 = sbr.rel (%p251) target = $region32
        $region31: #{tpu_custom_call.1} parent=23 // pred_region
          %s254 = sand.u32 %s24, 1
          %s255 = scalar_lea.sflag [#allocation7], %s254
          %s256 = sand.u32 %s102, 1
          %s257 = smul.addr %s256, 4
          %s258 = scalar_lea.vmem [#allocation8], %s257
          %s259 = smul.u32 2, %s24
          %s261 = ssub.s32 64, 64
          %262 = vsyncadd %s255, %s261
          %s263 = smul.addr %s259, 32
          %s264 = scalar_lea.hbm %s3, %s263
          %s266 = sshll.u32 %s258, 4
          %s267 = int_to_ptr.vmem [resolvable:$true] %s266
          %269 = dma.hbm_to_vmem [thread:$0]  %s264, 64, %s267, %s255
        $region32: #{tpu_custom_call.1} parent=23 // pred_fallthru
          _
      $region24: #{tpu_custom_call.1} parent=5 // pred_fallthru
        _
      %p270 = scmp.le.s32.totalorder 1, %s24
      %p271 = scmp.lt.s32.totalorder %s24, 3
      %p272 = pnand %p270, %p271
      %p273 = pneg %p272
      // Predicated region
      $region33: #{tpu_custom_call.1} parent=5 // pred_check
        _
      $region34: #{tpu_custom_call.1} parent=5 // pred_check_branch
        %275 = sbr.rel (%p272) target = $region36
      $region35: #{tpu_custom_call.1} parent=5 // pred_region
        %s276 = ssub.s32 %s24, 1
        // Predicated region
        $region37: #{tpu_custom_call.1} parent=35 // pred_check
          %p277 = pneg %p66
        $region38: #{tpu_custom_call.1} parent=35 // pred_check_branch
          %279 = sbr.rel (%p277) target = $region40
        $region39: #{tpu_custom_call.1} parent=35 // pred_region
          %280 = dma.done [#allocation4], 640
        $region40: #{tpu_custom_call.1} parent=35 // pred_fallthru
          _
        %s281 = sand.u32 %s29, 1
        %s282 = scalar_lea.sflag [#allocation7], %s281
        %s283 = sand.u32 %s79, 1
        %s284 = smul.addr %s283, 1280
        %s285 = scalar_lea.vmem [#allocation6], %s284
        // Predicated region
        $region41: #{tpu_custom_call.1} parent=35 // pred_check
          %p286 = pneg %p92
        $region42: #{tpu_custom_call.1} parent=35 // pred_check_branch
          %288 = sbr.rel (%p286) target = $region44
        $region43: #{tpu_custom_call.1} parent=35 // pred_region
          %289 = dma.done %s282, 20480
        $region44: #{tpu_custom_call.1} parent=35 // pred_fallthru
          _
        %s290 = sand.u32 %s29, 1
        %s291 = scalar_lea.sflag [#allocation7], %s290
        %s292 = sand.u32 %s105, 1
        %s293 = smul.addr %s292, 4
        %s294 = scalar_lea.vmem [#allocation8], %s293
        // Predicated region
        $region45: #{tpu_custom_call.1} parent=35 // pred_check
          %p295 = pneg %p118
        $region46: #{tpu_custom_call.1} parent=35 // pred_check_branch
          %297 = sbr.rel (%p295) target = $region48
        $region47: #{tpu_custom_call.1} parent=35 // pred_region
          %298 = dma.done %s291, 64
        $region48: #{tpu_custom_call.1} parent=35 // pred_fallthru
          _
        %p299 = pneg %p45
        %p300 = pneg %p42
        %p301 = pneg %p66
        %p302 = pneg %p63
        %s303 = sand.u32 %s29, 1
        %s304 = scalar_lea.sflag [#allocation7], %s303
        %s305 = sand.u32 %s79, 1
        %s306 = smul.addr %s305, 1280
        %s307 = scalar_lea.vmem [#allocation6], %s306
        %p308 = pneg %p92
        %p309 = pneg %p89
        %s310 = sand.u32 %s29, 1
        %s311 = scalar_lea.sflag [#allocation7], %s310
        %s312 = sand.u32 %s105, 1
        %s313 = smul.addr %s312, 4
        %s314 = scalar_lea.vmem [#allocation8], %s313
        %p315 = pneg %p118
        %p316 = pneg %p115
        %p317 = pneg %p144
        %p318 = pneg %p141
        %s319 = sand.u32 %s131, 1
        %s320 = scalar_lea.sflag [#allocation5], %s319
        %s321 = sand.u32 %s131, 1
        %s322 = smul.addr %s321, 8
        %s323 = scalar_lea.vmem [#allocation9], %s322
        %p324 = pneg %p170
        %p325 = pneg %p167
        %s326 = sand.u32 %s29, 1
        %s327 = scalar_lea.sflag [#allocation11], %s326
        %s328 = sand.u32 %s157, 1
        %s329 = smul.addr %s328, 2
        %s330 = scalar_lea.vmem [#allocation10], %s329
        %p331 = pneg %p196
        %p332 = pneg %p193
        %s333 = sand.u32 %s29, 1
        %s334 = scalar_lea.sflag [#allocation11], %s333
        %s335 = sand.u32 %s183, 1
        %s336 = smul.addr %s335, 2
        %s337 = scalar_lea.vmem [#allocation12], %s336
        %s338 = smul.u32 32, %s29
        %s339 = smul.u32 2, %s29
        %s340 = smul.u32 2, %s29
        %s341 = smul.u32 2, %s29
        %s342 = smul.u32 2, %s29
        %v343 = vld [vmem:[#allocation3] sm:$0xff]
        %v344 = vld [vmem:[#allocation3 + $0x8] sm:$0xff]
        %v345 = vld [vmem:[#allocation3 + $0x10] sm:$0xff]
        %v346 = vld [vmem:[#allocation3 + $0x18] sm:$0xff]
        %v347 = vld [vmem:[#allocation3 + $0x20] sm:$0xff]
        %v348 = vld [vmem:[%s285] sm:$0xff]
        %v349 = vld [vmem:[%s285 + $0x8] sm:$0xff]
        %v350 = vld [vmem:[%s285 + $0x10] sm:$0xff]
        %v351 = vld [vmem:[%s285 + $0x18] sm:$0xff]
        %v352 = vld [vmem:[%s285 + $0x20] sm:$0xff]
        %v353 = vld [vmem:[%s285 + $0x28] sm:$0xff]
        %v354 = vld [vmem:[%s285 + $0x30] sm:$0xff]
        %v355 = vld [vmem:[%s285 + $0x38] sm:$0xff]
        %v356 = vld [vmem:[%s285 + $0x40] sm:$0xff]
        %v357 = vld [vmem:[%s285 + $0x48] sm:$0xff]
        %v358 = vld [vmem:[%s285 + $0x50] sm:$0xff]
        %v359 = vld [vmem:[%s285 + $0x58] sm:$0xff]
        %v360 = vld [vmem:[%s285 + $0x60] sm:$0xff]
        %v361 = vld [vmem:[%s285 + $0x68] sm:$0xff]
        %v362 = vld [vmem:[%s285 + $0x70] sm:$0xff]
        %v363 = vld [vmem:[%s285 + $0x78] sm:$0xff]
        %v364 = vld [vmem:[%s285 + $0x80] sm:$0xff]
        %v365 = vld [vmem:[%s285 + $0x88] sm:$0xff]
        %v366 = vld [vmem:[%s285 + $0x90] sm:$0xff]
        %v367 = vld [vmem:[%s285 + $0x98] sm:$0xff]
        %v368 = vld [vmem:[%s285 + $0xa0] sm:$0xff]
        %v369 = vld [vmem:[%s285 + $0xa8] sm:$0xff]
        %v370 = vld [vmem:[%s285 + $0xb0] sm:$0xff]
        %v371 = vld [vmem:[%s285 + $0xb8] sm:$0xff]
        %v372 = vld [vmem:[%s285 + $0xc0] sm:$0xff]
        %v373 = vld [vmem:[%s285 + $0xc8] sm:$0xff]
        %v374 = vld [vmem:[%s285 + $0xd0] sm:$0xff]
        %v375 = vld [vmem:[%s285 + $0xd8] sm:$0xff]
        %v376 = vld [vmem:[%s285 + $0xe0] sm:$0xff]
        %v377 = vld [vmem:[%s285 + $0xe8] sm:$0xff]
        %v378 = vld [vmem:[%s285 + $0xf0] sm:$0xff]
        %v379 = vld [vmem:[%s285 + $0xf8] sm:$0xff]
        %v380 = vld [vmem:[%s285 + $0x100] sm:$0xff]
        %v381 = vld [vmem:[%s285 + $0x108] sm:$0xff]
        %v382 = vld [vmem:[%s285 + $0x110] sm:$0xff]
        %v383 = vld [vmem:[%s285 + $0x118] sm:$0xff]
        %v384 = vld [vmem:[%s285 + $0x120] sm:$0xff]
        %v385 = vld [vmem:[%s285 + $0x128] sm:$0xff]
        %v386 = vld [vmem:[%s285 + $0x130] sm:$0xff]
        %v387 = vld [vmem:[%s285 + $0x138] sm:$0xff]
        %v388 = vld [vmem:[%s285 + $0x140] sm:$0xff]
        %v389 = vld [vmem:[%s285 + $0x148] sm:$0xff]
        %v390 = vld [vmem:[%s285 + $0x150] sm:$0xff]
        %v391 = vld [vmem:[%s285 + $0x158] sm:$0xff]
        %v392 = vld [vmem:[%s285 + $0x160] sm:$0xff]
        %v393 = vld [vmem:[%s285 + $0x168] sm:$0xff]
        %v394 = vld [vmem:[%s285 + $0x170] sm:$0xff]
        %v395 = vld [vmem:[%s285 + $0x178] sm:$0xff]
        %v396 = vld [vmem:[%s285 + $0x180] sm:$0xff]
        %v397 = vld [vmem:[%s285 + $0x188] sm:$0xff]
        %v398 = vld [vmem:[%s285 + $0x190] sm:$0xff]
        %v399 = vld [vmem:[%s285 + $0x198] sm:$0xff]
        %v400 = vld [vmem:[%s285 + $0x1a0] sm:$0xff]
        %v401 = vld [vmem:[%s285 + $0x1a8] sm:$0xff]
        %v402 = vld [vmem:[%s285 + $0x1b0] sm:$0xff]
        %v403 = vld [vmem:[%s285 + $0x1b8] sm:$0xff]
        %v404 = vld [vmem:[%s285 + $0x1c0] sm:$0xff]
        %v405 = vld [vmem:[%s285 + $0x1c8] sm:$0xff]
        %v406 = vld [vmem:[%s285 + $0x1d0] sm:$0xff]
        %v407 = vld [vmem:[%s285 + $0x1d8] sm:$0xff]
        %v408 = vld [vmem:[%s285 + $0x1e0] sm:$0xff]
        %v409 = vld [vmem:[%s285 + $0x1e8] sm:$0xff]
        %v410 = vld [vmem:[%s285 + $0x1f0] sm:$0xff]
        %v411 = vld [vmem:[%s285 + $0x1f8] sm:$0xff]
        %v412 = vld [vmem:[%s285 + $0x200] sm:$0xff]
        %v413 = vld [vmem:[%s285 + $0x208] sm:$0xff]
        %v414 = vld [vmem:[%s285 + $0x210] sm:$0xff]
        %v415 = vld [vmem:[%s285 + $0x218] sm:$0xff]
        %v416 = vld [vmem:[%s285 + $0x220] sm:$0xff]
        %v417 = vld [vmem:[%s285 + $0x228] sm:$0xff]
        %v418 = vld [vmem:[%s285 + $0x230] sm:$0xff]
        %v419 = vld [vmem:[%s285 + $0x238] sm:$0xff]
        %v420 = vld [vmem:[%s285 + $0x240] sm:$0xff]
        %v421 = vld [vmem:[%s285 + $0x248] sm:$0xff]
        %v422 = vld [vmem:[%s285 + $0x250] sm:$0xff]
        %v423 = vld [vmem:[%s285 + $0x258] sm:$0xff]
        %v424 = vld [vmem:[%s285 + $0x260] sm:$0xff]
        %v425 = vld [vmem:[%s285 + $0x268] sm:$0xff]
        %v426 = vld [vmem:[%s285 + $0x270] sm:$0xff]
        %v427 = vld [vmem:[%s285 + $0x278] sm:$0xff]
        %v428 = vld [vmem:[%s285 + $0x280] sm:$0xff]
        %v429 = vld [vmem:[%s285 + $0x288] sm:$0xff]
        %v430 = vld [vmem:[%s285 + $0x290] sm:$0xff]
        %v431 = vld [vmem:[%s285 + $0x298] sm:$0xff]
        %v432 = vld [vmem:[%s285 + $0x2a0] sm:$0xff]
        %v433 = vld [vmem:[%s285 + $0x2a8] sm:$0xff]
        %v434 = vld [vmem:[%s285 + $0x2b0] sm:$0xff]
        %v435 = vld [vmem:[%s285 + $0x2b8] sm:$0xff]
        %v436 = vld [vmem:[%s285 + $0x2c0] sm:$0xff]
        %v437 = vld [vmem:[%s285 + $0x2c8] sm:$0xff]
        %v438 = vld [vmem:[%s285 + $0x2d0] sm:$0xff]
        %v439 = vld [vmem:[%s285 + $0x2d8] sm:$0xff]
        %v440 = vld [vmem:[%s285 + $0x2e0] sm:$0xff]
        %v441 = vld [vmem:[%s285 + $0x2e8] sm:$0xff]
        %v442 = vld [vmem:[%s285 + $0x2f0] sm:$0xff]
        %v443 = vld [vmem:[%s285 + $0x2f8] sm:$0xff]
        %v444 = vld [vmem:[%s285 + $0x300] sm:$0xff]
        %v445 = vld [vmem:[%s285 + $0x308] sm:$0xff]
        %v446 = vld [vmem:[%s285 + $0x310] sm:$0xff]
        %v447 = vld [vmem:[%s285 + $0x318] sm:$0xff]
        %v448 = vld [vmem:[%s285 + $0x320] sm:$0xff]
        %v449 = vld [vmem:[%s285 + $0x328] sm:$0xff]
        %v450 = vld [vmem:[%s285 + $0x330] sm:$0xff]
        %v451 = vld [vmem:[%s285 + $0x338] sm:$0xff]
        %v452 = vld [vmem:[%s285 + $0x340] sm:$0xff]
        %v453 = vld [vmem:[%s285 + $0x348] sm:$0xff]
        %v454 = vld [vmem:[%s285 + $0x350] sm:$0xff]
        %v455 = vld [vmem:[%s285 + $0x358] sm:$0xff]
        %v456 = vld [vmem:[%s285 + $0x360] sm:$0xff]
        %v457 = vld [vmem:[%s285 + $0x368] sm:$0xff]
        %v458 = vld [vmem:[%s285 + $0x370] sm:$0xff]
        %v459 = vld [vmem:[%s285 + $0x378] sm:$0xff]
        %v460 = vld [vmem:[%s285 + $0x380] sm:$0xff]
        %v461 = vld [vmem:[%s285 + $0x388] sm:$0xff]
        %v462 = vld [vmem:[%s285 + $0x390] sm:$0xff]
        %v463 = vld [vmem:[%s285 + $0x398] sm:$0xff]
        %v464 = vld [vmem:[%s285 + $0x3a0] sm:$0xff]
        %v465 = vld [vmem:[%s285 + $0x3a8] sm:$0xff]
        %v466 = vld [vmem:[%s285 + $0x3b0] sm:$0xff]
        %v467 = vld [vmem:[%s285 + $0x3b8] sm:$0xff]
        %v468 = vld [vmem:[%s285 + $0x3c0] sm:$0xff]
        %v469 = vld [vmem:[%s285 + $0x3c8] sm:$0xff]
        %v470 = vld [vmem:[%s285 + $0x3d0] sm:$0xff]
        %v471 = vld [vmem:[%s285 + $0x3d8] sm:$0xff]
        %v472 = vld [vmem:[%s285 + $0x3e0] sm:$0xff]
        %v473 = vld [vmem:[%s285 + $0x3e8] sm:$0xff]
        %v474 = vld [vmem:[%s285 + $0x3f0] sm:$0xff]
        %v475 = vld [vmem:[%s285 + $0x3f8] sm:$0xff]
        %v476 = vld [vmem:[%s285 + $0x400] sm:$0xff]
        %v477 = vld [vmem:[%s285 + $0x408] sm:$0xff]
        %v478 = vld [vmem:[%s285 + $0x410] sm:$0xff]
        %v479 = vld [vmem:[%s285 + $0x418] sm:$0xff]
        %v480 = vld [vmem:[%s285 + $0x420] sm:$0xff]
        %v481 = vld [vmem:[%s285 + $0x428] sm:$0xff]
        %v482 = vld [vmem:[%s285 + $0x430] sm:$0xff]
        %v483 = vld [vmem:[%s285 + $0x438] sm:$0xff]
        %v484 = vld [vmem:[%s285 + $0x440] sm:$0xff]
        %v485 = vld [vmem:[%s285 + $0x448] sm:$0xff]
        %v486 = vld [vmem:[%s285 + $0x450] sm:$0xff]
        %v487 = vld [vmem:[%s285 + $0x458] sm:$0xff]
        %v488 = vld [vmem:[%s285 + $0x460] sm:$0xff]
        %v489 = vld [vmem:[%s285 + $0x468] sm:$0xff]
        %v490 = vld [vmem:[%s285 + $0x470] sm:$0xff]
        %v491 = vld [vmem:[%s285 + $0x478] sm:$0xff]
        %v492 = vld [vmem:[%s285 + $0x480] sm:$0xff]
        %v493 = vld [vmem:[%s285 + $0x488] sm:$0xff]
        %v494 = vld [vmem:[%s285 + $0x490] sm:$0xff]
        %v495 = vld [vmem:[%s285 + $0x498] sm:$0xff]
        %v496 = vld [vmem:[%s285 + $0x4a0] sm:$0xff]
        %v497 = vld [vmem:[%s285 + $0x4a8] sm:$0xff]
        %v498 = vld [vmem:[%s285 + $0x4b0] sm:$0xff]
        %v499 = vld [vmem:[%s285 + $0x4b8] sm:$0xff]
        %v500 = vld [vmem:[%s285 + $0x4c0] sm:$0xff]
        %v501 = vld [vmem:[%s285 + $0x4c8] sm:$0xff]
        %v502 = vld [vmem:[%s285 + $0x4d0] sm:$0xff]
        %v503 = vld [vmem:[%s285 + $0x4d8] sm:$0xff]
        %v504 = vld [vmem:[%s285 + $0x4e0] sm:$0xff]
        %v505 = vld [vmem:[%s285 + $0x4e8] sm:$0xff]
        %v506 = vld [vmem:[%s285 + $0x4f0] sm:$0xff]
        %v507 = vld [vmem:[%s285 + $0x4f8] sm:$0xff]
        %v513 = vunpack.c.l.b16 %v343
        %v514 = vunpack.c.h.b16 %v343
        %v515 = vunpack.c.l.b16 %v344
        %v516 = vunpack.c.h.b16 %v344
        %v517 = vunpack.c.l.b16 %v345
        %v518 = vunpack.c.h.b16 %v345
        %v519 = vunpack.c.l.b16 %v346
        %v520 = vunpack.c.h.b16 %v346
        %v521 = vunpack.c.l.b16 %v347
        %v522 = vunpack.c.h.b16 %v347
        %v523 = vpack.c.b16 %v513, %v513
        %v524 = vpack.c.b16 %v514, %v514
        %v525 = vpack.c.b16 %v515, %v515
        %v526 = vpack.c.b16 %v516, %v516
        %v527 = vpack.c.b16 %v517, %v517
        %v528 = vpack.c.b16 %v518, %v518
        %v529 = vpack.c.b16 %v519, %v519
        %v530 = vpack.c.b16 %v520, %v520
        %v531 = vpack.c.b16 %v521, %v521
        %v532 = vpack.c.b16 %v522, %v522
        %v703 = vunpack.c.l.b16 %v348
        %v704 = vunpack.c.h.b16 %v348
        %v705 = vunpack.c.l.b16 %v349
        %v706 = vunpack.c.h.b16 %v349
        %v707 = vunpack.c.l.b16 %v350
        %v708 = vunpack.c.h.b16 %v350
        %v709 = vunpack.c.l.b16 %v351
        %v710 = vunpack.c.h.b16 %v351
        %v711 = vunpack.c.l.b16 %v352
        %v712 = vunpack.c.h.b16 %v352
        %v713 = vunpack.c.l.b16 %v353
        %v714 = vunpack.c.h.b16 %v353
        %v715 = vunpack.c.l.b16 %v354
        %v716 = vunpack.c.h.b16 %v354
        %v717 = vunpack.c.l.b16 %v355
        %v718 = vunpack.c.h.b16 %v355
        %v719 = vunpack.c.l.b16 %v356
        %v720 = vunpack.c.h.b16 %v356
        %v721 = vunpack.c.l.b16 %v357
        %v722 = vunpack.c.h.b16 %v357
        %v723 = vunpack.c.l.b16 %v358
        %v724 = vunpack.c.h.b16 %v358
        %v725 = vunpack.c.l.b16 %v359
        %v726 = vunpack.c.h.b16 %v359
        %v727 = vunpack.c.l.b16 %v360
        %v728 = vunpack.c.h.b16 %v360
        %v729 = vunpack.c.l.b16 %v361
        %v730 = vunpack.c.h.b16 %v361
        %v731 = vunpack.c.l.b16 %v362
        %v732 = vunpack.c.h.b16 %v362
        %v733 = vunpack.c.l.b16 %v363
        %v734 = vunpack.c.h.b16 %v363
        %v735 = vunpack.c.l.b16 %v364
        %v736 = vunpack.c.h.b16 %v364
        %v737 = vunpack.c.l.b16 %v365
        %v738 = vunpack.c.h.b16 %v365
        %v739 = vunpack.c.l.b16 %v366
        %v740 = vunpack.c.h.b16 %v366
        %v741 = vunpack.c.l.b16 %v367
        %v742 = vunpack.c.h.b16 %v367
        %v743 = vunpack.c.l.b16 %v368
        %v744 = vunpack.c.h.b16 %v368
        %v745 = vunpack.c.l.b16 %v369
        %v746 = vunpack.c.h.b16 %v369
        %v747 = vunpack.c.l.b16 %v370
        %v748 = vunpack.c.h.b16 %v370
        %v749 = vunpack.c.l.b16 %v371
        %v750 = vunpack.c.h.b16 %v371
        %v751 = vunpack.c.l.b16 %v372
        %v752 = vunpack.c.h.b16 %v372
        %v753 = vunpack.c.l.b16 %v373
        %v754 = vunpack.c.h.b16 %v373
        %v755 = vunpack.c.l.b16 %v374
        %v756 = vunpack.c.h.b16 %v374
        %v757 = vunpack.c.l.b16 %v375
        %v758 = vunpack.c.h.b16 %v375
        %v759 = vunpack.c.l.b16 %v376
        %v760 = vunpack.c.h.b16 %v376
        %v761 = vunpack.c.l.b16 %v377
        %v762 = vunpack.c.h.b16 %v377
        %v763 = vunpack.c.l.b16 %v378
        %v764 = vunpack.c.h.b16 %v378
        %v765 = vunpack.c.l.b16 %v379
        %v766 = vunpack.c.h.b16 %v379
        %v767 = vunpack.c.l.b16 %v380
        %v768 = vunpack.c.h.b16 %v380
        %v769 = vunpack.c.l.b16 %v381
        %v770 = vunpack.c.h.b16 %v381
        %v771 = vunpack.c.l.b16 %v382
        %v772 = vunpack.c.h.b16 %v382
        %v773 = vunpack.c.l.b16 %v383
        %v774 = vunpack.c.h.b16 %v383
        %v775 = vunpack.c.l.b16 %v384
        %v776 = vunpack.c.h.b16 %v384
        %v777 = vunpack.c.l.b16 %v385
        %v778 = vunpack.c.h.b16 %v385
        %v779 = vunpack.c.l.b16 %v386
        %v780 = vunpack.c.h.b16 %v386
        %v781 = vunpack.c.l.b16 %v387
        %v782 = vunpack.c.h.b16 %v387
        %v783 = vunpack.c.l.b16 %v388
        %v784 = vunpack.c.h.b16 %v388
        %v785 = vunpack.c.l.b16 %v389
        %v786 = vunpack.c.h.b16 %v389
        %v787 = vunpack.c.l.b16 %v390
        %v788 = vunpack.c.h.b16 %v390
        %v789 = vunpack.c.l.b16 %v391
        %v790 = vunpack.c.h.b16 %v391
        %v791 = vunpack.c.l.b16 %v392
        %v792 = vunpack.c.h.b16 %v392
        %v793 = vunpack.c.l.b16 %v393
        %v794 = vunpack.c.h.b16 %v393
        %v795 = vunpack.c.l.b16 %v394
        %v796 = vunpack.c.h.b16 %v394
        %v797 = vunpack.c.l.b16 %v395
        %v798 = vunpack.c.h.b16 %v395
        %v799 = vunpack.c.l.b16 %v396
        %v800 = vunpack.c.h.b16 %v396
        %v801 = vunpack.c.l.b16 %v397
        %v802 = vunpack.c.h.b16 %v397
        %v803 = vunpack.c.l.b16 %v398
        %v804 = vunpack.c.h.b16 %v398
        %v805 = vunpack.c.l.b16 %v399
        %v806 = vunpack.c.h.b16 %v399
        %v807 = vunpack.c.l.b16 %v400
        %v808 = vunpack.c.h.b16 %v400
        %v809 = vunpack.c.l.b16 %v401
        %v810 = vunpack.c.h.b16 %v401
        %v811 = vunpack.c.l.b16 %v402
        %v812 = vunpack.c.h.b16 %v402
        %v813 = vunpack.c.l.b16 %v403
        %v814 = vunpack.c.h.b16 %v403
        %v815 = vunpack.c.l.b16 %v404
        %v816 = vunpack.c.h.b16 %v404
        %v817 = vunpack.c.l.b16 %v405
        %v818 = vunpack.c.h.b16 %v405
        %v819 = vunpack.c.l.b16 %v406
        %v820 = vunpack.c.h.b16 %v406
        %v821 = vunpack.c.l.b16 %v407
        %v822 = vunpack.c.h.b16 %v407
        %v823 = vunpack.c.l.b16 %v408
        %v824 = vunpack.c.h.b16 %v408
        %v825 = vunpack.c.l.b16 %v409
        %v826 = vunpack.c.h.b16 %v409
        %v827 = vunpack.c.l.b16 %v410
        %v828 = vunpack.c.h.b16 %v410
        %v829 = vunpack.c.l.b16 %v411
        %v830 = vunpack.c.h.b16 %v411
        %v831 = vunpack.c.l.b16 %v412
        %v832 = vunpack.c.h.b16 %v412
        %v833 = vunpack.c.l.b16 %v413
        %v834 = vunpack.c.h.b16 %v413
        %v835 = vunpack.c.l.b16 %v414
        %v836 = vunpack.c.h.b16 %v414
        %v837 = vunpack.c.l.b16 %v415
        %v838 = vunpack.c.h.b16 %v415
        %v839 = vunpack.c.l.b16 %v416
        %v840 = vunpack.c.h.b16 %v416
        %v841 = vunpack.c.l.b16 %v417
        %v842 = vunpack.c.h.b16 %v417
        %v843 = vunpack.c.l.b16 %v418
        %v844 = vunpack.c.h.b16 %v418
        %v845 = vunpack.c.l.b16 %v419
        %v846 = vunpack.c.h.b16 %v419
        %v847 = vunpack.c.l.b16 %v420
        %v848 = vunpack.c.h.b16 %v420
        %v849 = vunpack.c.l.b16 %v421
        %v850 = vunpack.c.h.b16 %v421
        %v851 = vunpack.c.l.b16 %v422
        %v852 = vunpack.c.h.b16 %v422
        %v853 = vunpack.c.l.b16 %v423
        %v854 = vunpack.c.h.b16 %v423
        %v855 = vunpack.c.l.b16 %v424
        %v856 = vunpack.c.h.b16 %v424
        %v857 = vunpack.c.l.b16 %v425
        %v858 = vunpack.c.h.b16 %v425
        %v859 = vunpack.c.l.b16 %v426
        %v860 = vunpack.c.h.b16 %v426
        %v861 = vunpack.c.l.b16 %v427
        %v862 = vunpack.c.h.b16 %v427
        %v863 = vunpack.c.l.b16 %v428
        %v864 = vunpack.c.h.b16 %v428
        %v865 = vunpack.c.l.b16 %v429
        %v866 = vunpack.c.h.b16 %v429
        %v867 = vunpack.c.l.b16 %v430
        %v868 = vunpack.c.h.b16 %v430
        %v869 = vunpack.c.l.b16 %v431
        %v870 = vunpack.c.h.b16 %v431
        %v871 = vunpack.c.l.b16 %v432
        %v872 = vunpack.c.h.b16 %v432
        %v873 = vunpack.c.l.b16 %v433
        %v874 = vunpack.c.h.b16 %v433
        %v875 = vunpack.c.l.b16 %v434
        %v876 = vunpack.c.h.b16 %v434
        %v877 = vunpack.c.l.b16 %v435
        %v878 = vunpack.c.h.b16 %v435
        %v879 = vunpack.c.l.b16 %v436
        %v880 = vunpack.c.h.b16 %v436
        %v881 = vunpack.c.l.b16 %v437
        %v882 = vunpack.c.h.b16 %v437
        %v883 = vunpack.c.l.b16 %v438
        %v884 = vunpack.c.h.b16 %v438
        %v885 = vunpack.c.l.b16 %v439
        %v886 = vunpack.c.h.b16 %v439
        %v887 = vunpack.c.l.b16 %v440
        %v888 = vunpack.c.h.b16 %v440
        %v889 = vunpack.c.l.b16 %v441
        %v890 = vunpack.c.h.b16 %v441
        %v891 = vunpack.c.l.b16 %v442
        %v892 = vunpack.c.h.b16 %v442
        %v893 = vunpack.c.l.b16 %v443
        %v894 = vunpack.c.h.b16 %v443
        %v895 = vunpack.c.l.b16 %v444
        %v896 = vunpack.c.h.b16 %v444
        %v897 = vunpack.c.l.b16 %v445
        %v898 = vunpack.c.h.b16 %v445
        %v899 = vunpack.c.l.b16 %v446
        %v900 = vunpack.c.h.b16 %v446
        %v901 = vunpack.c.l.b16 %v447
        %v902 = vunpack.c.h.b16 %v447
        %v903 = vunpack.c.l.b16 %v448
        %v904 = vunpack.c.h.b16 %v448
        %v905 = vunpack.c.l.b16 %v449
        %v906 = vunpack.c.h.b16 %v449
        %v907 = vunpack.c.l.b16 %v450
        %v908 = vunpack.c.h.b16 %v450
        %v909 = vunpack.c.l.b16 %v451
        %v910 = vunpack.c.h.b16 %v451
        %v911 = vunpack.c.l.b16 %v452
        %v912 = vunpack.c.h.b16 %v452
        %v913 = vunpack.c.l.b16 %v453
        %v914 = vunpack.c.h.b16 %v453
        %v915 = vunpack.c.l.b16 %v454
        %v916 = vunpack.c.h.b16 %v454
        %v917 = vunpack.c.l.b16 %v455
        %v918 = vunpack.c.h.b16 %v455
        %v919 = vunpack.c.l.b16 %v456
        %v920 = vunpack.c.h.b16 %v456
        %v921 = vunpack.c.l.b16 %v457
        %v922 = vunpack.c.h.b16 %v457
        %v923 = vunpack.c.l.b16 %v458
        %v924 = vunpack.c.h.b16 %v458
        %v925 = vunpack.c.l.b16 %v459
        %v926 = vunpack.c.h.b16 %v459
        %v927 = vunpack.c.l.b16 %v460
        %v928 = vunpack.c.h.b16 %v460
        %v929 = vunpack.c.l.b16 %v461
        %v930 = vunpack.c.h.b16 %v461
        %v931 = vunpack.c.l.b16 %v462
        %v932 = vunpack.c.h.b16 %v462
        %v933 = vunpack.c.l.b16 %v463
        %v934 = vunpack.c.h.b16 %v463
        %v935 = vunpack.c.l.b16 %v464
        %v936 = vunpack.c.h.b16 %v464
        %v937 = vunpack.c.l.b16 %v465
        %v938 = vunpack.c.h.b16 %v465
        %v939 = vunpack.c.l.b16 %v466
        %v940 = vunpack.c.h.b16 %v466
        %v941 = vunpack.c.l.b16 %v467
        %v942 = vunpack.c.h.b16 %v467
        %v943 = vunpack.c.l.b16 %v468
        %v944 = vunpack.c.h.b16 %v468
        %v945 = vunpack.c.l.b16 %v469
        %v946 = vunpack.c.h.b16 %v469
        %v947 = vunpack.c.l.b16 %v470
        %v948 = vunpack.c.h.b16 %v470
        %v949 = vunpack.c.l.b16 %v471
        %v950 = vunpack.c.h.b16 %v471
        %v951 = vunpack.c.l.b16 %v472
        %v952 = vunpack.c.h.b16 %v472
        %v953 = vunpack.c.l.b16 %v473
        %v954 = vunpack.c.h.b16 %v473
        %v955 = vunpack.c.l.b16 %v474
        %v956 = vunpack.c.h.b16 %v474
        %v957 = vunpack.c.l.b16 %v475
        %v958 = vunpack.c.h.b16 %v475
        %v959 = vunpack.c.l.b16 %v476
        %v960 = vunpack.c.h.b16 %v476
        %v961 = vunpack.c.l.b16 %v477
        %v962 = vunpack.c.h.b16 %v477
        %v963 = vunpack.c.l.b16 %v478
        %v964 = vunpack.c.h.b16 %v478
        %v965 = vunpack.c.l.b16 %v479
        %v966 = vunpack.c.h.b16 %v479
        %v967 = vunpack.c.l.b16 %v480
        %v968 = vunpack.c.h.b16 %v480
        %v969 = vunpack.c.l.b16 %v481
        %v970 = vunpack.c.h.b16 %v481
        %v971 = vunpack.c.l.b16 %v482
        %v972 = vunpack.c.h.b16 %v482
        %v973 = vunpack.c.l.b16 %v483
        %v974 = vunpack.c.h.b16 %v483
        %v975 = vunpack.c.l.b16 %v484
        %v976 = vunpack.c.h.b16 %v484
        %v977 = vunpack.c.l.b16 %v485
        %v978 = vunpack.c.h.b16 %v485
        %v979 = vunpack.c.l.b16 %v486
        %v980 = vunpack.c.h.b16 %v486
        %v981 = vunpack.c.l.b16 %v487
        %v982 = vunpack.c.h.b16 %v487
        %v983 = vunpack.c.l.b16 %v488
        %v984 = vunpack.c.h.b16 %v488
        %v985 = vunpack.c.l.b16 %v489
        %v986 = vunpack.c.h.b16 %v489
        %v987 = vunpack.c.l.b16 %v490
        %v988 = vunpack.c.h.b16 %v490
        %v989 = vunpack.c.l.b16 %v491
        %v990 = vunpack.c.h.b16 %v491
        %v991 = vunpack.c.l.b16 %v492
        %v992 = vunpack.c.h.b16 %v492
        %v993 = vunpack.c.l.b16 %v493
        %v994 = vunpack.c.h.b16 %v493
        %v995 = vunpack.c.l.b16 %v494
        %v996 = vunpack.c.h.b16 %v494
        %v997 = vunpack.c.l.b16 %v495
        %v998 = vunpack.c.h.b16 %v495
        %v999 = vunpack.c.l.b16 %v496
        %v1000 = vunpack.c.h.b16 %v496
        %v1001 = vunpack.c.l.b16 %v497
        %v1002 = vunpack.c.h.b16 %v497
        %v1003 = vunpack.c.l.b16 %v498
        %v1004 = vunpack.c.h.b16 %v498
        %v1005 = vunpack.c.l.b16 %v499
        %v1006 = vunpack.c.h.b16 %v499
        %v1007 = vunpack.c.l.b16 %v500
        %v1008 = vunpack.c.h.b16 %v500
        %v1009 = vunpack.c.l.b16 %v501
        %v1010 = vunpack.c.h.b16 %v501
        %v1011 = vunpack.c.l.b16 %v502
        %v1012 = vunpack.c.h.b16 %v502
        %v1013 = vunpack.c.l.b16 %v503
        %v1014 = vunpack.c.h.b16 %v503
        %v1015 = vunpack.c.l.b16 %v504
        %v1016 = vunpack.c.h.b16 %v504
        %v1017 = vunpack.c.l.b16 %v505
        %v1018 = vunpack.c.h.b16 %v505
        %v1019 = vunpack.c.l.b16 %v506
        %v1020 = vunpack.c.h.b16 %v506
        %v1021 = vunpack.c.l.b16 %v507
        %v1022 = vunpack.c.h.b16 %v507
        %v1023 = vpack.c.b16 %v713, %v703
        %v1024 = vpack.c.b16 %v714, %v704
        %v1025 = vpack.c.b16 %v715, %v705
        %v1026 = vpack.c.b16 %v716, %v706
        %v1027 = vpack.c.b16 %v717, %v707
        %v1028 = vpack.c.b16 %v718, %v708
        %v1029 = vpack.c.b16 %v719, %v709
        %v1030 = vpack.c.b16 %v720, %v710
        %v1031 = vpack.c.b16 %v721, %v711
        %v1032 = vpack.c.b16 %v722, %v712
        %v1033 = vpack.c.b16 %v733, %v723
        %v1034 = vpack.c.b16 %v734, %v724
        %v1035 = vpack.c.b16 %v735, %v725
        %v1036 = vpack.c.b16 %v736, %v726
        %v1037 = vpack.c.b16 %v737, %v727
        %v1038 = vpack.c.b16 %v738, %v728
        %v1039 = vpack.c.b16 %v739, %v729
        %v1040 = vpack.c.b16 %v740, %v730
        %v1041 = vpack.c.b16 %v741, %v731
        %v1042 = vpack.c.b16 %v742, %v732
        %v1043 = vpack.c.b16 %v753, %v743
        %v1044 = vpack.c.b16 %v754, %v744
        %v1045 = vpack.c.b16 %v755, %v745
        %v1046 = vpack.c.b16 %v756, %v746
        %v1047 = vpack.c.b16 %v757, %v747
        %v1048 = vpack.c.b16 %v758, %v748
        %v1049 = vpack.c.b16 %v759, %v749
        %v1050 = vpack.c.b16 %v760, %v750
        %v1051 = vpack.c.b16 %v761, %v751
        %v1052 = vpack.c.b16 %v762, %v752
        %v1053 = vpack.c.b16 %v773, %v763
        %v1054 = vpack.c.b16 %v774, %v764
        %v1055 = vpack.c.b16 %v775, %v765
        %v1056 = vpack.c.b16 %v776, %v766
        %v1057 = vpack.c.b16 %v777, %v767
        %v1058 = vpack.c.b16 %v778, %v768
        %v1059 = vpack.c.b16 %v779, %v769
        %v1060 = vpack.c.b16 %v780, %v770
        %v1061 = vpack.c.b16 %v781, %v771
        %v1062 = vpack.c.b16 %v782, %v772
        %v1063 = vpack.c.b16 %v793, %v783
        %v1064 = vpack.c.b16 %v794, %v784
        %v1065 = vpack.c.b16 %v795, %v785
        %v1066 = vpack.c.b16 %v796, %v786
        %v1067 = vpack.c.b16 %v797, %v787
        %v1068 = vpack.c.b16 %v798, %v788
        %v1069 = vpack.c.b16 %v799, %v789
        %v1070 = vpack.c.b16 %v800, %v790
        %v1071 = vpack.c.b16 %v801, %v791
        %v1072 = vpack.c.b16 %v802, %v792
        %v1073 = vpack.c.b16 %v813, %v803
        %v1074 = vpack.c.b16 %v814, %v804
        %v1075 = vpack.c.b16 %v815, %v805
        %v1076 = vpack.c.b16 %v816, %v806
        %v1077 = vpack.c.b16 %v817, %v807
        %v1078 = vpack.c.b16 %v818, %v808
        %v1079 = vpack.c.b16 %v819, %v809
        %v1080 = vpack.c.b16 %v820, %v810
        %v1081 = vpack.c.b16 %v821, %v811
        %v1082 = vpack.c.b16 %v822, %v812
        %v1083 = vpack.c.b16 %v833, %v823
        %v1084 = vpack.c.b16 %v834, %v824
        %v1085 = vpack.c.b16 %v835, %v825
        %v1086 = vpack.c.b16 %v836, %v826
        %v1087 = vpack.c.b16 %v837, %v827
        %v1088 = vpack.c.b16 %v838, %v828
        %v1089 = vpack.c.b16 %v839, %v829
        %v1090 = vpack.c.b16 %v840, %v830
        %v1091 = vpack.c.b16 %v841, %v831
        %v1092 = vpack.c.b16 %v842, %v832
        %v1093 = vpack.c.b16 %v853, %v843
        %v1094 = vpack.c.b16 %v854, %v844
        %v1095 = vpack.c.b16 %v855, %v845
        %v1096 = vpack.c.b16 %v856, %v846
        %v1097 = vpack.c.b16 %v857, %v847
        %v1098 = vpack.c.b16 %v858, %v848
        %v1099 = vpack.c.b16 %v859, %v849
        %v1100 = vpack.c.b16 %v860, %v850
        %v1101 = vpack.c.b16 %v861, %v851
        %v1102 = vpack.c.b16 %v862, %v852
        %v1103 = vpack.c.b16 %v873, %v863
        %v1104 = vpack.c.b16 %v874, %v864
        %v1105 = vpack.c.b16 %v875, %v865
        %v1106 = vpack.c.b16 %v876, %v866
        %v1107 = vpack.c.b16 %v877, %v867
        %v1108 = vpack.c.b16 %v878, %v868
        %v1109 = vpack.c.b16 %v879, %v869
        %v1110 = vpack.c.b16 %v880, %v870
        %v1111 = vpack.c.b16 %v881, %v871
        %v1112 = vpack.c.b16 %v882, %v872
        %v1113 = vpack.c.b16 %v893, %v883
        %v1114 = vpack.c.b16 %v894, %v884
        %v1115 = vpack.c.b16 %v895, %v885
        %v1116 = vpack.c.b16 %v896, %v886
        %v1117 = vpack.c.b16 %v897, %v887
        %v1118 = vpack.c.b16 %v898, %v888
        %v1119 = vpack.c.b16 %v899, %v889
        %v1120 = vpack.c.b16 %v900, %v890
        %v1121 = vpack.c.b16 %v901, %v891
        %v1122 = vpack.c.b16 %v902, %v892
        %v1123 = vpack.c.b16 %v913, %v903
        %v1124 = vpack.c.b16 %v914, %v904
        %v1125 = vpack.c.b16 %v915, %v905
        %v1126 = vpack.c.b16 %v916, %v906
        %v1127 = vpack.c.b16 %v917, %v907
        %v1128 = vpack.c.b16 %v918, %v908
        %v1129 = vpack.c.b16 %v919, %v909
        %v1130 = vpack.c.b16 %v920, %v910
        %v1131 = vpack.c.b16 %v921, %v911
        %v1132 = vpack.c.b16 %v922, %v912
        %v1133 = vpack.c.b16 %v933, %v923
        %v1134 = vpack.c.b16 %v934, %v924
        %v1135 = vpack.c.b16 %v935, %v925
        %v1136 = vpack.c.b16 %v936, %v926
        %v1137 = vpack.c.b16 %v937, %v927
        %v1138 = vpack.c.b16 %v938, %v928
        %v1139 = vpack.c.b16 %v939, %v929
        %v1140 = vpack.c.b16 %v940, %v930
        %v1141 = vpack.c.b16 %v941, %v931
        %v1142 = vpack.c.b16 %v942, %v932
        %v1143 = vpack.c.b16 %v953, %v943
        %v1144 = vpack.c.b16 %v954, %v944
        %v1145 = vpack.c.b16 %v955, %v945
        %v1146 = vpack.c.b16 %v956, %v946
        %v1147 = vpack.c.b16 %v957, %v947
        %v1148 = vpack.c.b16 %v958, %v948
        %v1149 = vpack.c.b16 %v959, %v949
        %v1150 = vpack.c.b16 %v960, %v950
        %v1151 = vpack.c.b16 %v961, %v951
        %v1152 = vpack.c.b16 %v962, %v952
        %v1153 = vpack.c.b16 %v973, %v963
        %v1154 = vpack.c.b16 %v974, %v964
        %v1155 = vpack.c.b16 %v975, %v965
        %v1156 = vpack.c.b16 %v976, %v966
        %v1157 = vpack.c.b16 %v977, %v967
        %v1158 = vpack.c.b16 %v978, %v968
        %v1159 = vpack.c.b16 %v979, %v969
        %v1160 = vpack.c.b16 %v980, %v970
        %v1161 = vpack.c.b16 %v981, %v971
        %v1162 = vpack.c.b16 %v982, %v972
        %v1163 = vpack.c.b16 %v993, %v983
        %v1164 = vpack.c.b16 %v994, %v984
        %v1165 = vpack.c.b16 %v995, %v985
        %v1166 = vpack.c.b16 %v996, %v986
        %v1167 = vpack.c.b16 %v997, %v987
        %v1168 = vpack.c.b16 %v998, %v988
        %v1169 = vpack.c.b16 %v999, %v989
        %v1170 = vpack.c.b16 %v1000, %v990
        %v1171 = vpack.c.b16 %v1001, %v991
        %v1172 = vpack.c.b16 %v1002, %v992
        %v1173 = vpack.c.b16 %v1013, %v1003
        %v1174 = vpack.c.b16 %v1014, %v1004
        %v1175 = vpack.c.b16 %v1015, %v1005
        %v1176 = vpack.c.b16 %v1016, %v1006
        %v1177 = vpack.c.b16 %v1017, %v1007
        %v1178 = vpack.c.b16 %v1018, %v1008
        %v1179 = vpack.c.b16 %v1019, %v1009
        %v1180 = vpack.c.b16 %v1020, %v1010
        %v1181 = vpack.c.b16 %v1021, %v1011
        %v1182 = vpack.c.b16 %v1022, %v1012
        %1343 = vmatprep.subr.bf16.mxu0 %v1024
        %1344 = vmatpush1.bf16.xpose.msra.mxu0 %v1023
        %1345 = vmatprep.subr.bf16.mxu0 %v1034
        %1346 = vmatpush1.bf16.xpose.msra.mxu0 %v1033
        %1347 = vmatprep.subr.bf16.mxu0 %v1044
        %1348 = vmatpush1.bf16.xpose.msra.mxu0 %v1043
        %1349 = vmatprep.subr.bf16.mxu0 %v1054
        %1350 = vmatpush1.bf16.xpose.msra.mxu0 %v1053
        %1351 = vmatprep.subr.bf16.mxu0 %v1064
        %1352 = vmatpush1.bf16.xpose.msra.mxu0 %v1063
        %1353 = vmatprep.subr.bf16.mxu0 %v1074
        %1354 = vmatpush1.bf16.xpose.msra.mxu0 %v1073
        %1355 = vmatprep.subr.bf16.mxu0 %v1084
        %1356 = vmatpush1.bf16.xpose.msra.mxu0 %v1083
        %1357 = vmatprep.subr.bf16.mxu0 %v1094
        %1358 = vmatpush1.bf16.xpose.msra.mxu0 %v1093
        %1359 = vmatprep.subr.bf16.mxu0 %v1104
        %1360 = vmatpush1.bf16.xpose.msra.mxu0 %v1103
        %1361 = vmatprep.subr.bf16.mxu0 %v1114
        %1362 = vmatpush1.bf16.xpose.msra.mxu0 %v1113
        %1363 = vmatprep.subr.bf16.mxu0 %v1124
        %1364 = vmatpush1.bf16.xpose.msra.mxu0 %v1123
        %1365 = vmatprep.subr.bf16.mxu0 %v1134
        %1366 = vmatpush1.bf16.xpose.msra.mxu0 %v1133
        %1367 = vmatprep.subr.bf16.mxu0 %v1144
        %1368 = vmatpush1.bf16.xpose.msra.mxu0 %v1143
        %1369 = vmatprep.subr.bf16.mxu0 %v1154
        %1370 = vmatpush1.bf16.xpose.msra.mxu0 %v1153
        %1371 = vmatprep.subr.bf16.mxu0 %v1164
        %1372 = vmatpush1.bf16.xpose.msra.mxu0 %v1163
        %1373 = vmatprep.subr.bf16.mxu0 %v1174
        %1374 = vmatpush1.bf16.xpose.msra.mxu0 %v1173
        %1375 = vmatprep.mubr.bf16.mxu0 %v524
        %1376 = vmatmul.mubr.bf16.gmra.mrb[0].mxu0 %v523
        %v1377 = vpop.f32.mrb[0].mxu0
        %v1378 = vadd.f32 0.0, %v1377
        %v1379 = vpop.f32.mrb[0].mxu0
        %v1380 = vadd.f32 0.0, %v1379
        %v1381 = vpop.f32.mrb[0].mxu0
        %v1382 = vpop.f32.mrb[0].mxu0
        %1383 = vdwg.mxu0
        %1384 = vmatprep.subr.bf16.mxu0 %v1026
        %1385 = vmatpush1.bf16.xpose.msra.mxu0 %v1025
        %1386 = vmatprep.subr.bf16.mxu0 %v1036
        %1387 = vmatpush1.bf16.xpose.msra.mxu0 %v1035
        %1388 = vmatprep.subr.bf16.mxu0 %v1046
        %1389 = vmatpush1.bf16.xpose.msra.mxu0 %v1045
        %1390 = vmatprep.subr.bf16.mxu0 %v1056
        %1391 = vmatpush1.bf16.xpose.msra.mxu0 %v1055
        %1392 = vmatprep.subr.bf16.mxu0 %v1066
        %1393 = vmatpush1.bf16.xpose.msra.mxu0 %v1065
        %1394 = vmatprep.subr.bf16.mxu0 %v1076
        %1395 = vmatpush1.bf16.xpose.msra.mxu0 %v1075
        %1396 = vmatprep.subr.bf16.mxu0 %v1086
        %1397 = vmatpush1.bf16.xpose.msra.mxu0 %v1085
        %1398 = vmatprep.subr.bf16.mxu0 %v1096
        %1399 = vmatpush1.bf16.xpose.msra.mxu0 %v1095
        %1400 = vmatprep.subr.bf16.mxu0 %v1106
        %1401 = vmatpush1.bf16.xpose.msra.mxu0 %v1105
        %1402 = vmatprep.subr.bf16.mxu0 %v1116
        %1403 = vmatpush1.bf16.xpose.msra.mxu0 %v1115
        %1404 = vmatprep.subr.bf16.mxu0 %v1126
        %1405 = vmatpush1.bf16.xpose.msra.mxu0 %v1125
        %1406 = vmatprep.subr.bf16.mxu0 %v1136
        %1407 = vmatpush1.bf16.xpose.msra.mxu0 %v1135
        %1408 = vmatprep.subr.bf16.mxu0 %v1146
        %1409 = vmatpush1.bf16.xpose.msra.mxu0 %v1145
        %1410 = vmatprep.subr.bf16.mxu0 %v1156
        %1411 = vmatpush1.bf16.xpose.msra.mxu0 %v1155
        %1412 = vmatprep.subr.bf16.mxu0 %v1166
        %1413 = vmatpush1.bf16.xpose.msra.mxu0 %v1165
        %1414 = vmatprep.subr.bf16.mxu0 %v1176
        %1415 = vmatpush1.bf16.xpose.msra.mxu0 %v1175
        %1416 = vmatprep.mubr.bf16.mxu0 %v526
        %1417 = vmatmul.mubr.bf16.gmra.mrb[0].mxu0 %v525
        %v1418 = vpop.f32.mrb[0].mxu0
        %v1419 = vadd.f32 %v1378, %v1418
        %v1420 = vpop.f32.mrb[0].mxu0
        %v1421 = vadd.f32 %v1380, %v1420
        %v1422 = vpop.f32.mrb[0].mxu0
        %v1423 = vpop.f32.mrb[0].mxu0
        %1424 = vdwg.mxu0
        %1425 = vmatprep.subr.bf16.mxu0 %v1028
        %1426 = vmatpush1.bf16.xpose.msra.mxu0 %v1027
        %1427 = vmatprep.subr.bf16.mxu0 %v1038
        %1428 = vmatpush1.bf16.xpose.msra.mxu0 %v1037
        %1429 = vmatprep.subr.bf16.mxu0 %v1048
        %1430 = vmatpush1.bf16.xpose.msra.mxu0 %v1047
        %1431 = vmatprep.subr.bf16.mxu0 %v1058
        %1432 = vmatpush1.bf16.xpose.msra.mxu0 %v1057
        %1433 = vmatprep.subr.bf16.mxu0 %v1068
        %1434 = vmatpush1.bf16.xpose.msra.mxu0 %v1067
        %1435 = vmatprep.subr.bf16.mxu0 %v1078
        %1436 = vmatpush1.bf16.xpose.msra.mxu0 %v1077
        %1437 = vmatprep.subr.bf16.mxu0 %v1088
        %1438 = vmatpush1.bf16.xpose.msra.mxu0 %v1087
        %1439 = vmatprep.subr.bf16.mxu0 %v1098
        %1440 = vmatpush1.bf16.xpose.msra.mxu0 %v1097
        %1441 = vmatprep.subr.bf16.mxu0 %v1108
        %1442 = vmatpush1.bf16.xpose.msra.mxu0 %v1107
        %1443 = vmatprep.subr.bf16.mxu0 %v1118
        %1444 = vmatpush1.bf16.xpose.msra.mxu0 %v1117
        %1445 = vmatprep.subr.bf16.mxu0 %v1128
        %1446 = vmatpush1.bf16.xpose.msra.mxu0 %v1127
        %1447 = vmatprep.subr.bf16.mxu0 %v1138
        %1448 = vmatpush1.bf16.xpose.msra.mxu0 %v1137
        %1449 = vmatprep.subr.bf16.mxu0 %v1148
        %1450 = vmatpush1.bf16.xpose.msra.mxu0 %v1147
        %1451 = vmatprep.subr.bf16.mxu0 %v1158
        %1452 = vmatpush1.bf16.xpose.msra.mxu0 %v1157
        %1453 = vmatprep.subr.bf16.mxu0 %v1168
        %1454 = vmatpush1.bf16.xpose.msra.mxu0 %v1167
        %1455 = vmatprep.subr.bf16.mxu0 %v1178
        %1456 = vmatpush1.bf16.xpose.msra.mxu0 %v1177
        %1457 = vmatprep.mubr.bf16.mxu0 %v528
        %1458 = vmatmul.mubr.bf16.gmra.mrb[0].mxu0 %v527
        %v1459 = vpop.f32.mrb[0].mxu0
        %v1460 = vadd.f32 %v1419, %v1459
        %v1461 = vpop.f32.mrb[0].mxu0
        %v1462 = vadd.f32 %v1421, %v1461
        %v1463 = vpop.f32.mrb[0].mxu0
        %v1464 = vpop.f32.mrb[0].mxu0
        %1465 = vdwg.mxu0
        %1466 = vmatprep.subr.bf16.mxu0 %v1030
        %1467 = vmatpush1.bf16.xpose.msra.mxu0 %v1029
        %1468 = vmatprep.subr.bf16.mxu0 %v1040
        %1469 = vmatpush1.bf16.xpose.msra.mxu0 %v1039
        %1470 = vmatprep.subr.bf16.mxu0 %v1050
        %1471 = vmatpush1.bf16.xpose.msra.mxu0 %v1049
        %1472 = vmatprep.subr.bf16.mxu0 %v1060
        %1473 = vmatpush1.bf16.xpose.msra.mxu0 %v1059
        %1474 = vmatprep.subr.bf16.mxu0 %v1070
        %1475 = vmatpush1.bf16.xpose.msra.mxu0 %v1069
        %1476 = vmatprep.subr.bf16.mxu0 %v1080
        %1477 = vmatpush1.bf16.xpose.msra.mxu0 %v1079
        %1478 = vmatprep.subr.bf16.mxu0 %v1090
        %1479 = vmatpush1.bf16.xpose.msra.mxu0 %v1089
        %1480 = vmatprep.subr.bf16.mxu0 %v1100
        %1481 = vmatpush1.bf16.xpose.msra.mxu0 %v1099
        %1482 = vmatprep.subr.bf16.mxu0 %v1110
        %1483 = vmatpush1.bf16.xpose.msra.mxu0 %v1109
        %1484 = vmatprep.subr.bf16.mxu0 %v1120
        %1485 = vmatpush1.bf16.xpose.msra.mxu0 %v1119
        %1486 = vmatprep.subr.bf16.mxu0 %v1130
        %1487 = vmatpush1.bf16.xpose.msra.mxu0 %v1129
        %1488 = vmatprep.subr.bf16.mxu0 %v1140
        %1489 = vmatpush1.bf16.xpose.msra.mxu0 %v1139
        %1490 = vmatprep.subr.bf16.mxu0 %v1150
        %1491 = vmatpush1.bf16.xpose.msra.mxu0 %v1149
        %1492 = vmatprep.subr.bf16.mxu0 %v1160
        %1493 = vmatpush1.bf16.xpose.msra.mxu0 %v1159
        %1494 = vmatprep.subr.bf16.mxu0 %v1170
        %1495 = vmatpush1.bf16.xpose.msra.mxu0 %v1169
        %1496 = vmatprep.subr.bf16.mxu0 %v1180
        %1497 = vmatpush1.bf16.xpose.msra.mxu0 %v1179
        %1498 = vmatprep.mubr.bf16.mxu0 %v530
        %1499 = vmatmul.mubr.bf16.gmra.mrb[0].mxu0 %v529
        %v1500 = vpop.f32.mrb[0].mxu0
        %v1501 = vadd.f32 %v1460, %v1500
        %v1502 = vpop.f32.mrb[0].mxu0
        %v1503 = vadd.f32 %v1462, %v1502
        %v1504 = vpop.f32.mrb[0].mxu0
        %v1505 = vpop.f32.mrb[0].mxu0
        %1506 = vdwg.mxu0
        %1507 = vmatprep.subr.bf16.mxu0 %v1032
        %1508 = vmatpush1.bf16.xpose.msra.mxu0 %v1031
        %1509 = vmatprep.subr.bf16.mxu0 %v1042
        %1510 = vmatpush1.bf16.xpose.msra.mxu0 %v1041
        %1511 = vmatprep.subr.bf16.mxu0 %v1052
        %1512 = vmatpush1.bf16.xpose.msra.mxu0 %v1051
        %1513 = vmatprep.subr.bf16.mxu0 %v1062
        %1514 = vmatpush1.bf16.xpose.msra.mxu0 %v1061
        %1515 = vmatprep.subr.bf16.mxu0 %v1072
        %1516 = vmatpush1.bf16.xpose.msra.mxu0 %v1071
        %1517 = vmatprep.subr.bf16.mxu0 %v1082
        %1518 = vmatpush1.bf16.xpose.msra.mxu0 %v1081
        %1519 = vmatprep.subr.bf16.mxu0 %v1092
        %1520 = vmatpush1.bf16.xpose.msra.mxu0 %v1091
        %1521 = vmatprep.subr.bf16.mxu0 %v1102
        %1522 = vmatpush1.bf16.xpose.msra.mxu0 %v1101
        %1523 = vmatprep.subr.bf16.mxu0 %v1112
        %1524 = vmatpush1.bf16.xpose.msra.mxu0 %v1111
        %1525 = vmatprep.subr.bf16.mxu0 %v1122
        %1526 = vmatpush1.bf16.xpose.msra.mxu0 %v1121
        %1527 = vmatprep.subr.bf16.mxu0 %v1132
        %1528 = vmatpush1.bf16.xpose.msra.mxu0 %v1131
        %1529 = vmatprep.subr.bf16.mxu0 %v1142
        %1530 = vmatpush1.bf16.xpose.msra.mxu0 %v1141
        %1531 = vmatprep.subr.bf16.mxu0 %v1152
        %1532 = vmatpush1.bf16.xpose.msra.mxu0 %v1151
        %1533 = vmatprep.subr.bf16.mxu0 %v1162
        %1534 = vmatpush1.bf16.xpose.msra.mxu0 %v1161
        %1535 = vmatprep.subr.bf16.mxu0 %v1172
        %1536 = vmatpush1.bf16.xpose.msra.mxu0 %v1171
        %1537 = vmatprep.subr.bf16.mxu0 %v1182
        %1538 = vmatpush1.bf16.xpose.msra.mxu0 %v1181
        %1539 = vmatprep.mubr.bf16.mxu0 %v532
        %1540 = vmatmul.mubr.bf16.gmra.mrb[0].mxu0 %v531
        %v1541 = vpop.f32.mrb[0].mxu0
        %v1542 = vadd.f32 %v1501, %v1541
        %v1543 = vpop.f32.mrb[0].mxu0
        %v1544 = vadd.f32 %v1503, %v1543
        %v1545 = vpop.f32.mrb[0].mxu0
        %v1546 = vpop.f32.mrb[0].mxu0
        %1547 = vdwg.mxu0
        %v1548 = vrot.slane %v1542, 4
        %v1549 = vadd.f32 %v1542, %v1548
        %v1550 = vrot.slane %v1549, 2
        %v1551 = vadd.f32 %v1549, %v1550
        %v1552 = vrot.slane %v1551, 1
        %v1553 = vadd.f32 %v1551, %v1552
        %v1554 = vrot.slane %v1544, 4
        %v1555 = vadd.f32 %v1544, %v1554
        %v1556 = vrot.slane %v1555, 2
        %v1557 = vadd.f32 %v1555, %v1556
        %v1558 = vrot.slane %v1557, 1
        %v1559 = vadd.f32 %v1557, %v1558
        %v1560 = vrcp.pop 8.0
        %v1561 = vmul.f32 %v1553, %v1560
        %v1562 = vmul.f32 %v1559, %v1560
        %v1563 = vsub.f32 %v1542, %v1561
        %v1564 = vsub.f32 %v1544, %v1562
        %v1565 = vmul.f32 %v1563, %v1563
        %v1566 = vmul.f32 %v1564, %v1564
        %v1567 = vrot.slane %v1565, 4
        %v1568 = vadd.f32 %v1565, %v1567
        %v1569 = vrot.slane %v1568, 2
        %v1570 = vadd.f32 %v1568, %v1569
        %v1571 = vrot.slane %v1570, 1
        %v1572 = vadd.f32 %v1570, %v1571
        %v1573 = vrot.slane %v1566, 4
        %v1574 = vadd.f32 %v1566, %v1573
        %v1575 = vrot.slane %v1574, 2
        %v1576 = vadd.f32 %v1574, %v1575
        %v1577 = vrot.slane %v1576, 1
        %v1578 = vadd.f32 %v1576, %v1577
        %v1579 = vmul.f32 %v1572, %v1560
        %v1580 = vmul.f32 %v1578, %v1560
        %v1581 = vadd.f32 %v1579, 1e-05
        %v1582 = vadd.f32 %v1580, 1e-05
        %v1583 = vrsqrt.pop %v1581
        %v1584 = vrsqrt.pop %v1582
        %v1585 = vld [vmem:[%s294] sm:$0xf]
        %v1588 = vcombine.low %v1583, %v1584
        %v1590 = vunpack.c.l.s4 1983009808
        %v1591 = vunpack.c.0.s8 %v1590
        %v1592 = vlaneseq
        %v1593 = vshrl.u32 %v1592, 7
        %v1594 = vsub.s32 %v1591, %v1593
        %v1595 = vrot.slane %v1588, %v1594
        %v1597 = vmul.f32 %v1585, %v1595
        %v1598 = vmul.f32 %v1597, 2.0
        %v1600 = vlaneseq
        %v1601 = vshrl.u32 %v1600, 7
        %v1602 = vsub.s32 0, %v1601
        %v1603 = vrot.slane %v1585, %v1602
        %v1604 = vlaneseq
        %v1605 = vshrl.u32 %v1604, 7
        %v1606 = vsub.s32 2, %v1605
        %v1607 = vrot.slane %v1585, %v1606
        %v1610 = vmul.f32 %v1561, %v1603
        %v1611 = vmul.f32 %v1562, %v1607
        %v1612 = vmul.f32 %v1610, %v1583
        %v1613 = vmul.f32 %v1611, %v1584
        %v1616 = vcombine.low %v1612, %v1613
        %v1618 = vunpack.c.l.s4 1983009808
        %v1619 = vunpack.c.0.s8 %v1618
        %v1620 = vlaneseq
        %v1621 = vshrl.u32 %v1620, 7
        %v1622 = vsub.s32 %v1619, %v1621
        %v1623 = vrot.slane %v1616, %v1622
        %v1624 = vrot.slane %v1623, 7
        %v1626 = vsub.f32 %v1585, %v1624
        %v1627 = vmul.f32 %v1626, 2.0
        %v1628 = vlaneseq
        %v1629 = vshrl.u32 %v1628, 7
        %v1630 = vlaneseq
        %v1631 = vand.u32 %v1630, 127
        %v1632 = vadd.s32 %v1631, 128
        %s1633 = smul.u32 %s29, 256
        %v1634 = vstv %s1633
        %v1635 = vadd.s32 %v1631, %v1634
        %v1636 = vadd.s32 %v1632, %v1634
        %v1637 = vshll.u32 %v1629, 16
        %v1638 = vor.u32 %v1637, %v1635
        %v1639 = vor.u32 %v1637, %v1636
        %s1640 = sld [smem:[#allocation2]]
        %s1641 = smul.u32 %s1640, 2654435761
        %v1642 = vstv %s1641
        %v1643 = vxor.u32 %v1638, %v1642
        %v1644 = vxor.u32 %v1639, %v1642
        %v1645 = vadd.s32 %v1643, 2654435769
        %v1646 = vadd.s32 %v1644, 2654435769
        %v1647 = vshrl.u32 %v1645, 16
        %v1648 = vshrl.u32 %v1646, 16
        %v1649 = vxor.u32 %v1645, %v1647
        %v1650 = vxor.u32 %v1646, %v1648
        %v1651 = vmul.u32 %v1649, 569420461
        %v1652 = vmul.u32 %v1650, 569420461
        %v1653 = vshrl.u32 %v1651, 15
        %v1654 = vshrl.u32 %v1652, 15
        %v1655 = vxor.u32 %v1651, %v1653
        %v1656 = vxor.u32 %v1652, %v1654
        %v1657 = vmul.u32 %v1655, 1935289751
        %v1658 = vmul.u32 %v1656, 1935289751
        %v1659 = vshrl.u32 %v1657, 15
        %v1660 = vshrl.u32 %v1658, 15
        %v1661 = vxor.u32 %v1657, %v1659
        %v1662 = vxor.u32 %v1658, %v1660
        %vm1663 = vcmp.lt.u32.totalorder %v1661, 2147483648
        %vm1664 = vcmp.lt.u32.totalorder %v1662, 2147483648
        %v1666 = vlaneseq
        %v1667 = vshrl.u32 %v1666, 7
        %v1668 = vsub.s32 0, %v1667
        %v1669 = vrot.slane %v1598, %v1668
        %v1670 = vlaneseq
        %v1671 = vshrl.u32 %v1670, 7
        %v1672 = vsub.s32 2, %v1671
        %v1673 = vrot.slane %v1598, %v1672
        %v1676 = vlaneseq
        %v1677 = vshrl.u32 %v1676, 7
        %v1678 = vsub.s32 0, %v1677
        %v1679 = vrot.slane %v1669, %v1678
        %v1680 = vlaneseq
        %v1681 = vshrl.u32 %v1680, 7
        %v1682 = vsub.s32 0, %v1681
        %v1683 = vrot.slane %v1673, %v1682
        %v1684 = vmul.f32 %v1542, %v1679
        %v1685 = vmul.f32 %v1544, %v1683
        %v1687 = vlaneseq
        %v1688 = vshrl.u32 %v1687, 7
        %v1689 = vsub.s32 1, %v1688
        %v1690 = vrot.slane %v1627, %v1689
        %v1691 = vlaneseq
        %v1692 = vshrl.u32 %v1691, 7
        %v1693 = vsub.s32 3, %v1692
        %v1694 = vrot.slane %v1627, %v1693
        %v1697 = vlaneseq
        %v1698 = vshrl.u32 %v1697, 7
        %v1699 = vsub.s32 1, %v1698
        %v1700 = vrot.slane %v1690, %v1699
        %v1701 = vlaneseq
        %v1702 = vshrl.u32 %v1701, 7
        %v1703 = vsub.s32 1, %v1702
        %v1704 = vrot.slane %v1694, %v1703
        %v1705 = vadd.f32 %v1684, %v1700
        %v1706 = vadd.f32 %v1685, %v1704
        %v1707 = vsel %vm1663, %v1705, 0.0
        %v1708 = vsel %vm1664, %v1706, 0.0
        %v1709 = vpack.c.bf16 %v1707, %v1707
        %v1710 = vpack.c.bf16 %v1708, %v1708
        %v1713 = vunpack.c.l.b16 %v1709
        %v1714 = vunpack.c.l.b16 %v1710
        %v1715 = vpack.c.b16 %v1714, %v1713
        %1717 = vst [vmem:[%s323] sm:$0xff] %v1715
        %v1720 = vcombine.low %v1561, %v1562
        %v1722 = vunpack.c.l.s4 1966171168
        %v1723 = vunpack.c.0.s8 %v1722
        %v1724 = vlaneseq
        %v1725 = vshrl.u32 %v1724, 7
        %v1726 = vsub.s32 %v1723, %v1725
        %v1727 = vrot.slane %v1720, %v1726
        %v1729 = vunpack.c.l.s4 1966171168
        %v1730 = vunpack.c.0.s8 %v1729
        %v1731 = vlaneseq
        %v1732 = vshrl.u32 %v1731, 7
        %v1733 = vsub.s32 %v1730, %v1732
        %v1734 = vrot.slane %v1727, %v1733
        %v1736 = vlaneseq
        %vm1737 = vcmp.ge.s32.totalorder %v1736, 0
        %vm1738 = vcmp.lt.s32.totalorder %v1736, 256
        %vm1739 = vmand %vm1737, %vm1738
        %1740 = vst.msk [vmem:[%s330] sm:$0x3] %vm1739, %v1734
        %v1743 = vcombine.low %v1579, %v1580
        %v1745 = vunpack.c.l.s4 1966171168
        %v1746 = vunpack.c.0.s8 %v1745
        %v1747 = vlaneseq
        %v1748 = vshrl.u32 %v1747, 7
        %v1749 = vsub.s32 %v1746, %v1748
        %v1750 = vrot.slane %v1743, %v1749
        %v1752 = vunpack.c.l.s4 1966171168
        %v1753 = vunpack.c.0.s8 %v1752
        %v1754 = vlaneseq
        %v1755 = vshrl.u32 %v1754, 7
        %v1756 = vsub.s32 %v1753, %v1755
        %v1757 = vrot.slane %v1750, %v1756
        %1759 = vst.msk [vmem:[%s337] sm:$0x3] %vm1739, %v1757
        %s1760 = sand.u32 %s131, 1
        %s1761 = scalar_lea.sflag [#allocation5], %s1760
        %s1762 = sand.u32 %s131, 1
        %s1763 = smul.addr %s1762, 8
        %s1764 = scalar_lea.vmem [#allocation9], %s1763
        %s1765 = sand.u32 %s29, 1
        %s1766 = scalar_lea.sflag [#allocation11], %s1765
        %s1767 = sand.u32 %s157, 1
        %s1768 = smul.addr %s1767, 2
        %s1769 = scalar_lea.vmem [#allocation10], %s1768
        %s1770 = sand.u32 %s29, 1
        %s1771 = scalar_lea.sflag [#allocation11], %s1770
        %s1772 = sand.u32 %s183, 1
        %s1773 = smul.addr %s1772, 2
        %s1774 = scalar_lea.vmem [#allocation12], %s1773
        // Predicated region
        $region49: #{tpu_custom_call.1} parent=35 // pred_check
          %p1775 = pneg %p141
        $region50: #{tpu_custom_call.1} parent=35 // pred_check_branch
          %1777 = sbr.rel (%p1775) target = $region52
        $region51: #{tpu_custom_call.1} parent=35 // pred_region
          %s1778 = smul.u32 2, %s29
          %s1780 = ssub.s32 128, 128
          %1781 = vsyncadd %s1761, %s1780
          %s1782 = smul.addr %s1778, 64
          %s1783 = scalar_lea.hbm %s4, %s1782
          %s1785 = sshll.u32 %s1764, 4
          %s1786 = int_to_ptr.vmem [resolvable:$true] %s1785
          %1788 = dma.vmem_to_hbm [thread:$0]  %s1786, 128, %s1783, %s1761
        $region52: #{tpu_custom_call.1} parent=35 // pred_fallthru
          _
        // Predicated region
        $region53: #{tpu_custom_call.1} parent=35 // pred_check
          %p1789 = pneg %p167
        $region54: #{tpu_custom_call.1} parent=35 // pred_check_branch
          %1791 = sbr.rel (%p1789) target = $region56
        $region55: #{tpu_custom_call.1} parent=35 // pred_region
          %s1792 = smul.u32 2, %s29
          %s1794 = ssub.s32 32, 32
          %1795 = vsyncadd %s1766, %s1794
          %s1796 = smul.addr %s1792, 16
          %s1797 = scalar_lea.hbm %s5, %s1796
          %s1799 = sshll.u32 %s1769, 4
          %s1800 = int_to_ptr.vmem [resolvable:$true] %s1799
          %1802 = dma.vmem_to_hbm [thread:$0]  %s1800, 32, %s1797, %s1766
        $region56: #{tpu_custom_call.1} parent=35 // pred_fallthru
          _
        // Predicated region
        $region57: #{tpu_custom_call.1} parent=35 // pred_check
          %p1803 = pneg %p193
        $region58: #{tpu_custom_call.1} parent=35 // pred_check_branch
          %1805 = sbr.rel (%p1803) target = $region60
        $region59: #{tpu_custom_call.1} parent=35 // pred_region
          %s1806 = smul.u32 2, %s29
          %s1808 = ssub.s32 32, 32
          %1809 = vsyncadd %s1771, %s1808
          %s1810 = smul.addr %s1806, 16
          %s1811 = scalar_lea.hbm %s6, %s1810
          %s1813 = sshll.u32 %s1774, 4
          %s1814 = int_to_ptr.vmem [resolvable:$true] %s1813
          %1816 = dma.vmem_to_hbm [thread:$0]  %s1814, 32, %s1811, %s1771
        $region60: #{tpu_custom_call.1} parent=35 // pred_fallthru
          _
      $region36: #{tpu_custom_call.1} parent=5 // pred_fallthru
        _
      %p1817 = scmp.le.s32.totalorder 2, %s24
      // Predicated region
      $region61: #{tpu_custom_call.1} parent=5 // pred_check
        %p1818 = pneg %p1817
      $region62: #{tpu_custom_call.1} parent=5 // pred_check_branch
        %1820 = sbr.rel (%p1818) target = $region64
      $region63: #{tpu_custom_call.1} parent=5 // pred_region
        %s1821 = ssub.s32 %s24, 2
        // Predicated region
        $region65: #{tpu_custom_call.1} parent=63 // pred_check
          %p1822 = pneg %p147
        $region66: #{tpu_custom_call.1} parent=63 // pred_check_branch
          %1824 = sbr.rel (%p1822) target = $region68
        $region67: #{tpu_custom_call.1} parent=63 // pred_region
          %s1825 = sand.u32 %s132, 1
          %s1826 = scalar_lea.sflag [#allocation5], %s1825
          %s1827 = sand.u32 %s132, 1
          %s1828 = smul.addr %s1827, 8
          %s1829 = scalar_lea.vmem [#allocation9], %s1828
          %1830 = dma.done %s1826, 128
        $region68: #{tpu_custom_call.1} parent=63 // pred_fallthru
          _
        // Predicated region
        $region69: #{tpu_custom_call.1} parent=63 // pred_check
          %p1831 = pneg %p173
        $region70: #{tpu_custom_call.1} parent=63 // pred_check_branch
          %1833 = sbr.rel (%p1831) target = $region72
        $region71: #{tpu_custom_call.1} parent=63 // pred_region
          %s1834 = sand.u32 %s30, 1
          %s1835 = scalar_lea.sflag [#allocation11], %s1834
          %s1836 = sand.u32 %s158, 1
          %s1837 = smul.addr %s1836, 2
          %s1838 = scalar_lea.vmem [#allocation10], %s1837
          %1839 = dma.done %s1835, 32
        $region72: #{tpu_custom_call.1} parent=63 // pred_fallthru
          _
        // Predicated region
        $region73: #{tpu_custom_call.1} parent=63 // pred_check
          %p1840 = pneg %p199
        $region74: #{tpu_custom_call.1} parent=63 // pred_check_branch
          %1842 = sbr.rel (%p1840) target = $region76
        $region75: #{tpu_custom_call.1} parent=63 // pred_region
          %s1843 = sand.u32 %s30, 1
          %s1844 = scalar_lea.sflag [#allocation11], %s1843
          %s1845 = sand.u32 %s184, 1
          %s1846 = smul.addr %s1845, 2
          %s1847 = scalar_lea.vmem [#allocation12], %s1846
          %1848 = dma.done %s1844, 32
        $region76: #{tpu_custom_call.1} parent=63 // pred_fallthru
          _
      $region64: #{tpu_custom_call.1} parent=5 // pred_fallthru
        _
    $region6: #{tpu_custom_call.1} parent=1 // loop_footer
      %s28 = sadd.s32 1, %s24
    $region7: #{tpu_custom_call.1} parent=1 // loop_footer_branch
      %23 = sbr.rel target = $region3
    $region8: #{tpu_custom_call.1} parent=1 // loop_exit
      _
    %1849 = vsyncpa [#allocation4], 1
    %s1850 = scalar_lea.sflag [#allocation4], 1
    %1851 = vsyncpa %s1850, 1
    %1852 = vsyncpa [#allocation7], 1
    %s1853 = scalar_lea.sflag [#allocation7], 1
    %1854 = vsyncpa %s1853, 1
    %1855 = vsyncpa [#allocation5], 1
    %s1856 = scalar_lea.sflag [#allocation5], 1
    %1857 = vsyncpa %s1856, 1
    %1858 = vsyncpa [#allocation11], 1
    %s1859 = scalar_lea.sflag [#allocation11], 1
    %1860 = vsyncpa %s1859, 1

</llo_original>
